<compile_context>
chip_gen: v6e
topology: v6e:2x2x1
jax: 0.10.0
libtpu: 0.0.40
codegen_flags: <defaults>
</compile_context>

<pallas_src>
import jax
import jax.numpy as jnp
import numpy as np
from jax.experimental import pallas as pl

# ----------------------- configuration (synthetic) -----------------------
VOLUME = 16
SIZE0, SIZE1, SIZE2 = 8, 16, 4
DEPTH = 2
WIDTH = 64                        # width % 64 == 0
NDENSE = WIDTH * 4                # 256
B, S = 2, 8                       # batch, sequence
N = B * S                         # 16 rows
N_LAYERS = 2 + 2 * DEPTH          # 6 Linear+LayerNorm+ReLU stages
HEAD_DIM = SIZE0 + SIZE1 + SIZE2  # 28
OUT_LANES = 256                   # [heads(28)->pad 128 | mem(64)->pad 128]
MEM_COL = 128                     # mem starts at lane 128 of the output slab
LN_EPS = 1e-5

# per-stage (K, dout)
LAYER_DIMS = [(VOLUME * 6, NDENSE), (NDENSE, WIDTH),
              (WIDTH, NDENSE), (NDENSE, WIDTH),
              (WIDTH, NDENSE), (NDENSE, WIDTH)]

# packed bf16 weight slabs: "up" = dout=256 stages (0,2,4), "down" = dout=64 (1,3,5)
UP_KS = [VOLUME * 6, WIDTH, WIDTH]                  # 96, 64, 64
UP_OFFS = [0, UP_KS[0], UP_KS[0] + UP_KS[1]]        # 0, 96, 160  (16-aligned)
DN_OFFS = [0, NDENSE, 2 * NDENSE]                   # 0, 256, 512

# f32 misc slab rows: [0,WIDTH) fused head matrix, then 3 rows (bias,gamma,beta)
# per stage, then 1 row of fused head bias.
VEC_ROW = WIDTH                                     # 64
HEADB_ROW = WIDTH + 3 * N_LAYERS                    # 82
MISC_ROWS = HEADB_ROW + 1                           # 83


# ------------------------- fused forward kernel --------------------------
def fused_forward_kernel(x_ref, pool_ref, w_up_ref, w_dn_ref, misc_ref, out_ref):
    """x (N,V) f32 | pool (B,N) f32 | w_up (224,256) bf16 | w_dn (768,64) bf16 |
    misc (83,256) f32  ->  out (B,256) f32 = [o0|o1|o2|0..|mem|0..]."""

    def ln_relu(y, stage, dout):
        row = VEC_ROW + 3 * stage
        bias = misc_ref[pl.ds(row + 0, 1), pl.ds(0, dout)]
        gam  = misc_ref[pl.ds(row + 1, 1), pl.ds(0, dout)]
        beta = misc_ref[pl.ds(row + 2, 1), pl.ds(0, dout)]
        y = y + bias
        # One-pass LayerNorm statistics, clamped against cancellation.
        inv_d = jnp.float32(1.0 / dout)
        s1 = jnp.sum(y, axis=-1, keepdims=True)
        s2 = jnp.sum(y * y, axis=-1, keepdims=True)
        mu = s1 * inv_d
        var = jnp.maximum(s2 * inv_d - mu * mu, 0.0)
        yn = (y - mu) * jax.lax.rsqrt(var + LN_EPS)
        return jnp.maximum(yn * gam + beta, 0.0)

    # Feature expansion in f32; rational terms on the EUP via approx reciprocal.
    x1 = x_ref[...] * jnp.float32(1.0 / 3.8)
    x2 = x1 * x1
    x3 = x2 * x1
    c = jnp.float32(4.0 / 3.0)
    t = jnp.float32(1.0 / 3.0)
    xx = jnp.concatenate(
        [x1, x2, x3,
         c * pl.reciprocal(t + x1, approx=True),
         c * pl.reciprocal(t + x2, approx=True),
         c * pl.reciprocal(t + x3, approx=True)],
        axis=-1)                                                  # (N, 96) f32

    # embed + encoder: 3 x (256-wide "up" stage, 64-wide "down" stage).
    h = xx
    for p in range(1 + DEPTH):
        w_up = w_up_ref[pl.ds(UP_OFFS[p], UP_KS[p]), :]           # (K,256) bf16
        y = jnp.dot(h.astype(jnp.bfloat16), w_up,
                    preferred_element_type=jnp.float32)           # (N,256) f32
        h = ln_relu(y, 2 * p, NDENSE)
        w_dn = w_dn_ref[pl.ds(DN_OFFS[p], NDENSE), :]             # (256,64) bf16
        y = jnp.dot(h.astype(jnp.bfloat16), w_dn,
                    preferred_element_type=jnp.float32)           # (N,64) f32
        h = ln_relu(y, 2 * p + 1, WIDTH)

    # Masked-mean pooling as one (B,N)@(N,64) matmul (f32: 2 rows, negligible).
    mem = jnp.dot(pool_ref[...], h, preferred_element_type=jnp.float32)

    # Fused heads + identity passthrough of mem: one (B,64)@(64,256) matmul and
    # a single unmasked, lane-dense 256-wide store.
    head_w = misc_ref[pl.ds(0, WIDTH), :]                         # (64,256) f32
    head_b = misc_ref[pl.ds(HEADB_ROW, 1), :]                     # (1,256)  f32
    out_ref[...] = (jnp.dot(mem, head_w, preferred_element_type=jnp.float32)
                    + head_b)


# ----------------------------- full forward -----------------------------
def linear_net_forward(params, x, mask):
    b, s, v = x.shape
    n = b * s
    xf = x.reshape(n, v).astype(jnp.float32)

    # Block-diagonal masked-mean pooling matrix: pool[bi, bi*S+si] = keep/count.
    # (count clamp only guards the all-masked degenerate case.)
    keep = 1.0 - mask.astype(jnp.float32)                              # (B,S)
    count = jnp.maximum(jnp.sum(keep, axis=1, keepdims=True), 1.0)     # (B,1)
    pool = (jnp.eye(b, dtype=jnp.float32)[:, :, None]
            * (keep / count)[None, :, :]).reshape(b, n)                # (B,N)

    out_all = pl.pallas_call(
        fused_forward_kernel,
        out_shape=jax.ShapeDtypeStruct((b, OUT_LANES), jnp.float32),
        # No grid: 5 whole-array VMEM operands (~0.45 MiB total), one launch,
        # one lane-dense output writeback.  No vmem_limit override needed.
    )(xf, pool, params["w_up"], params["w_dn"], params["misc"])

    o0 = out_all[:, :SIZE0]
    o1 = out_all[:, SIZE0:SIZE0 + SIZE1]
    o2 = out_all[:, SIZE0 + SIZE1:HEAD_DIM]
    mem = out_all[:, MEM_COL:MEM_COL + WIDTH]
    return o0, o1, o2, mem


# ----------------------------- parameter init -----------------------------
def init_params(key):
    keys = jax.random.split(key, 4 * N_LAYERS + 6)
    kit = iter(keys)

    layers = []
    for (din, dout) in LAYER_DIMS:
        w  = jax.random.normal(next(kit), (din, dout), jnp.float32) * 0.05
        bb = jax.random.normal(next(kit), (1, dout), jnp.float32) * 0.1
        g  = 1.0 + jax.random.normal(next(kit), (1, dout), jnp.float32) * 0.1
        be = jax.random.normal(next(kit), (1, dout), jnp.float32) * 0.1
        layers.append((w, bb, g, be))

    heads = []
    for size in (SIZE0, SIZE1, SIZE2):
        hw = jax.random.normal(next(kit), (WIDTH, size), jnp.float32) * 0.05
        hb = jax.random.normal(next(kit), (size,), jnp.float32) * 0.1
        heads.append((hw, hb))
    out0, out1, out2 = heads

    # --- packed kernel operands (bf16 weight slabs + one f32 misc slab) ----
    w_up = jnp.concatenate([layers[0][0], layers[2][0], layers[4][0]],
                           axis=0).astype(jnp.bfloat16)            # (224,256)
    w_dn = jnp.concatenate([layers[1][0], layers[3][0], layers[5][0]],
                           axis=0).astype(jnp.bfloat16)            # (768,64)

    # Fused head matrix: [:, :28] = three heads, [:, 128:192] = I (mem pass-through).
    head_w = jnp.zeros((WIDTH, OUT_LANES), jnp.float32)
    head_w = head_w.at[:, :HEAD_DIM].set(
        jnp.concatenate([out0[0], out1[0], out2[0]], axis=1))
    head_w = head_w.at[:, MEM_COL:MEM_COL + WIDTH].set(
        jnp.eye(WIDTH, dtype=jnp.float32))
    head_b = jnp.zeros((1, OUT_LANES), jnp.float32)
    head_b = head_b.at[0, :HEAD_DIM].set(
        jnp.concatenate([out0[1], out1[1], out2[1]]))

    vec_rows = []
    for (w, bb, g, be) in layers:
        dout = w.shape[1]
        for row in (bb, g, be):
            vec_rows.append(jnp.pad(row, ((0, 0), (0, OUT_LANES - dout))))
    misc = jnp.concatenate([head_w] + vec_rows + [head_b], axis=0)  # (83,256)
    assert misc.shape == (MISC_ROWS, OUT_LANES)

    return {"layers": layers, "out0": out0, "out1": out1, "out2": out2,
            "w_up": w_up, "w_dn": w_dn, "misc": misc}


# ------------------------- pure-JAX reference -------------------------
def ref_forward(params, x, mask):
    """Reference with the module's exact structure (PyTorch semantics).
    Matmul operands are quantized to bf16 with f32 accumulation to mirror the
    kernel's MXU precision -- standard practice when validating a
    reduced-precision kernel.  Everything else (LN, ReLU, pooling, heads) is f32."""
    x1 = x.astype(jnp.float32) / 3.8
    x2 = x1 * x1
    x3 = x2 * x1
    xx = jnp.concatenate(
        [x1, x2, x3, 4 / 3 / (1 / 3 + x1), 4 / 3 / (1 / 3 + x2), 4 / 3 / (1 / 3 + x3)],
        axis=-1)
    h = xx
    for (w, bb, g, be) in params["layers"]:
        y = jnp.dot(h.astype(jnp.bfloat16), w.astype(jnp.bfloat16),
                    preferred_element_type=jnp.float32) + bb
        mu = jnp.mean(y, axis=-1, keepdims=True)
        var = jnp.mean((y - mu) ** 2, axis=-1, keepdims=True)
        h = jnp.maximum((y - mu) / jnp.sqrt(var + LN_EPS) * g + be, 0.0)
    m = mask[..., None]
    h = jnp.where(m, 0.0, h)
    mem = h.sum(1) / (h.shape[1] - m.astype(jnp.float32).sum(1))
    o0 = mem @ params["out0"][0] + params["out0"][1]
    o1 = mem @ params["out1"][0] + params["out1"][1]
    o2 = mem @ params["out2"][0] + params["out2"][1]
    return o0, o1, o2, mem


# --------------------------------- main ---------------------------------
if __name__ == "__main__":
    key = jax.random.PRNGKey(0)
    kp, kx, km = jax.random.split(key, 3)

    params = init_params(kp)
    # Inputs in [0,1): keeps the rational features 4/3/(1/3 + x^k) away from the
    # pole at x^k = -1/3 (an input-domain property of the original module, noted
    # in the review, not a kernel issue).
    x = jax.random.uniform(kx, (B, S, VOLUME), jnp.float32)
    # mask: True == masked out; guarantee at least one unmasked position per batch.
    mask = jax.random.bernoulli(km, 0.3, (B, S)).at[:, 0].set(False)

    fwd = jax.jit(linear_net_forward)
    outs = jax.block_until_ready(fwd(params, x, mask))

    refs = ref_forward(params, x, mask)
    # 1e-2 tolerance covers the EUP approx-reciprocal and MXU accumulation-order
    # differences on top of the shared bf16 operand quantization (actual error
    # is typically well below 1e-3).
    for o, r in zip(outs, refs):
        np.testing.assert_allclose(np.asarray(o), np.asarray(r), rtol=1e-2, atol=1e-2)

    print("KERNEL_OK")
</pallas_src>

<mosaic_0001>
module attributes {stable_mosaic.version = 11 : i64} {
  func.func @fused_forward_kernel(%arg0: memref<16x16xf32, #tpu.memory_space<vmem>>, %arg1: memref<2x16xf32, #tpu.memory_space<vmem>>, %arg2: memref<224x256xbf16, #tpu.memory_space<vmem>>, %arg3: memref<768x64xbf16, #tpu.memory_space<vmem>>, %arg4: memref<83x256xf32, #tpu.memory_space<vmem>>, %arg5: memref<2x256xf32, #tpu.memory_space<vmem>>) attributes {dimension_semantics = [], scalar_prefetch = 0 : i64, scratch_operands = 0 : i64, tpu.core_type = #tpu.core_type<tc>} {
    %c0 = arith.constant 0 : index
    %c0_0 = arith.constant 0 : index
    %0 = vector.load %arg0[%c0, %c0_0] : memref<16x16xf32, #tpu.memory_space<vmem>>, vector<16x16xf32>
    %cst = arith.constant 0.263157904 : f32
    %1 = vector.broadcast %cst : f32 to vector<16x16xf32>
    %2 = arith.mulf %0, %1 : vector<16x16xf32>
    %3 = arith.mulf %2, %2 : vector<16x16xf32>
    %4 = arith.mulf %3, %2 : vector<16x16xf32>
    %cst_1 = arith.constant 0.333333343 : f32
    %5 = vector.broadcast %cst_1 : f32 to vector<16x16xf32>
    %6 = arith.addf %5, %2 : vector<16x16xf32>
    %7 = tpu.reciprocal %6 {approx = true} : vector<16x16xf32> -> vector<16x16xf32>
    %cst_2 = arith.constant 1.33333337 : f32
    %8 = vector.broadcast %cst_2 : f32 to vector<16x16xf32>
    %9 = arith.mulf %8, %7 : vector<16x16xf32>
    %cst_3 = arith.constant 0.333333343 : f32
    %10 = vector.broadcast %cst_3 : f32 to vector<16x16xf32>
    %11 = arith.addf %10, %3 : vector<16x16xf32>
    %12 = tpu.reciprocal %11 {approx = true} : vector<16x16xf32> -> vector<16x16xf32>
    %cst_4 = arith.constant 1.33333337 : f32
    %13 = vector.broadcast %cst_4 : f32 to vector<16x16xf32>
    %14 = arith.mulf %13, %12 : vector<16x16xf32>
    %cst_5 = arith.constant 0.333333343 : f32
    %15 = vector.broadcast %cst_5 : f32 to vector<16x16xf32>
    %16 = arith.addf %15, %4 : vector<16x16xf32>
    %17 = tpu.reciprocal %16 {approx = true} : vector<16x16xf32> -> vector<16x16xf32>
    %cst_6 = arith.constant 1.33333337 : f32
    %18 = vector.broadcast %cst_6 : f32 to vector<16x16xf32>
    %19 = arith.mulf %18, %17 : vector<16x16xf32>
    %20 = tpu.concatenate %2, %3, %4, %9, %14, %19 in 1 : vector<16x16xf32>, vector<16x16xf32>, vector<16x16xf32>, vector<16x16xf32>, vector<16x16xf32>, vector<16x16xf32> -> vector<16x96xf32>
    %c0_7 = arith.constant 0 : index
    %c0_8 = arith.constant 0 : index
    %21 = vector.load %arg2[%c0_7, %c0_8] : memref<224x256xbf16, #tpu.memory_space<vmem>>, vector<96x256xbf16>
    %22 = arith.truncf %20 : vector<16x96xf32> to vector<16x96xbf16>
    %cst_9 = arith.constant dense<0.000000e+00> : vector<16x256xf32>
    %23 = tpu.matmul %22, %21, %cst_9 {dimension_numbers = #tpu.dot_dimension_numbers<[1], [0], [0], [1], [0, 0, 1, 1], [], []>} : vector<16x96xbf16>, vector<96x256xbf16>, vector<16x256xf32> -> vector<16x256xf32>
    %c64 = arith.constant 64 : index
    %c0_10 = arith.constant 0 : index
    %24 = vector.load %arg4[%c64, %c0_10] : memref<83x256xf32, #tpu.memory_space<vmem>>, vector<1x256xf32>
    %c65 = arith.constant 65 : index
    %c0_11 = arith.constant 0 : index
    %25 = vector.load %arg4[%c65, %c0_11] : memref<83x256xf32, #tpu.memory_space<vmem>>, vector<1x256xf32>
    %c66 = arith.constant 66 : index
    %c0_12 = arith.constant 0 : index
    %26 = vector.load %arg4[%c66, %c0_12] : memref<83x256xf32, #tpu.memory_space<vmem>>, vector<1x256xf32>
    %27 = vector.broadcast %24 : vector<1x256xf32> to vector<16x256xf32>
    %28 = arith.addf %23, %27 : vector<16x256xf32>
    %cst_13 = arith.constant dense<0.000000e+00> : vector<16xf32>
    %29 = vector.multi_reduction <add>, %28, %cst_13 [1] : vector<16x256xf32> to vector<16xf32>
    %30 = vector.shape_cast %29 : vector<16xf32> to vector<16x1xf32>
    %31 = arith.mulf %28, %28 : vector<16x256xf32>
    %cst_14 = arith.constant dense<0.000000e+00> : vector<16xf32>
    %32 = vector.multi_reduction <add>, %31, %cst_14 [1] : vector<16x256xf32> to vector<16xf32>
    %33 = vector.shape_cast %32 : vector<16xf32> to vector<16x1xf32>
    %cst_15 = arith.constant 3.906250e-03 : f32
    %34 = vector.broadcast %cst_15 : f32 to vector<16x1xf32>
    %35 = arith.mulf %30, %34 : vector<16x1xf32>
    %cst_16 = arith.constant 3.906250e-03 : f32
    %36 = vector.broadcast %cst_16 : f32 to vector<16x1xf32>
    %37 = arith.mulf %33, %36 : vector<16x1xf32>
    %38 = arith.mulf %35, %35 : vector<16x1xf32>
    %39 = arith.subf %37, %38 : vector<16x1xf32>
    %cst_17 = arith.constant 0.000000e+00 : f32
    %40 = vector.broadcast %cst_17 : f32 to vector<16x1xf32>
    %41 = arith.maximumf %39, %40 : vector<16x1xf32>
    %42 = vector.broadcast %35 : vector<16x1xf32> to vector<16x256xf32>
    %43 = arith.subf %28, %42 : vector<16x256xf32>
    %cst_18 = arith.constant 9.99999974E-6 : f32
    %44 = vector.broadcast %cst_18 : f32 to vector<16x1xf32>
    %45 = arith.addf %41, %44 : vector<16x1xf32>
    %46 = math.rsqrt %45 : vector<16x1xf32>
    %47 = vector.broadcast %46 : vector<16x1xf32> to vector<16x256xf32>
    %48 = arith.mulf %43, %47 : vector<16x256xf32>
    %49 = vector.broadcast %25 : vector<1x256xf32> to vector<16x256xf32>
    %50 = arith.mulf %48, %49 : vector<16x256xf32>
    %51 = vector.broadcast %26 : vector<1x256xf32> to vector<16x256xf32>
    %52 = arith.addf %50, %51 : vector<16x256xf32>
    %cst_19 = arith.constant 0.000000e+00 : f32
    %53 = vector.broadcast %cst_19 : f32 to vector<16x256xf32>
    %54 = arith.maximumf %52, %53 : vector<16x256xf32>
    %c0_20 = arith.constant 0 : index
    %c0_21 = arith.constant 0 : index
    %55 = vector.load %arg3[%c0_20, %c0_21] : memref<768x64xbf16, #tpu.memory_space<vmem>>, vector<256x64xbf16>
    %56 = arith.truncf %54 : vector<16x256xf32> to vector<16x256xbf16>
    %cst_22 = arith.constant dense<0.000000e+00> : vector<16x64xf32>
    %57 = tpu.matmul %56, %55, %cst_22 {dimension_numbers = #tpu.dot_dimension_numbers<[1], [0], [0], [1], [0, 0, 1, 1], [], []>} : vector<16x256xbf16>, vector<256x64xbf16>, vector<16x64xf32> -> vector<16x64xf32>
    %c67 = arith.constant 67 : index
    %c0_23 = arith.constant 0 : index
    %58 = vector.load %arg4[%c67, %c0_23] : memref<83x256xf32, #tpu.memory_space<vmem>>, vector<1x64xf32>
    %c68 = arith.constant 68 : index
    %c0_24 = arith.constant 0 : index
    %59 = vector.load %arg4[%c68, %c0_24] : memref<83x256xf32, #tpu.memory_space<vmem>>, vector<1x64xf32>
    %c69 = arith.constant 69 : index
    %c0_25 = arith.constant 0 : index
    %60 = vector.load %arg4[%c69, %c0_25] : memref<83x256xf32, #tpu.memory_space<vmem>>, vector<1x64xf32>
    %61 = vector.broadcast %58 : vector<1x64xf32> to vector<16x64xf32>
    %62 = arith.addf %57, %61 : vector<16x64xf32>
    %cst_26 = arith.constant dense<0.000000e+00> : vector<16xf32>
    %63 = vector.multi_reduction <add>, %62, %cst_26 [1] : vector<16x64xf32> to vector<16xf32>
    %64 = vector.shape_cast %63 : vector<16xf32> to vector<16x1xf32>
    %65 = arith.mulf %62, %62 : vector<16x64xf32>
    %cst_27 = arith.constant dense<0.000000e+00> : vector<16xf32>
    %66 = vector.multi_reduction <add>, %65, %cst_27 [1] : vector<16x64xf32> to vector<16xf32>
    %67 = vector.shape_cast %66 : vector<16xf32> to vector<16x1xf32>
    %cst_28 = arith.constant 1.562500e-02 : f32
    %68 = vector.broadcast %cst_28 : f32 to vector<16x1xf32>
    %69 = arith.mulf %64, %68 : vector<16x1xf32>
    %cst_29 = arith.constant 1.562500e-02 : f32
    %70 = vector.broadcast %cst_29 : f32 to vector<16x1xf32>
    %71 = arith.mulf %67, %70 : vector<16x1xf32>
    %72 = arith.mulf %69, %69 : vector<16x1xf32>
    %73 = arith.subf %71, %72 : vector<16x1xf32>
    %cst_30 = arith.constant 0.000000e+00 : f32
    %74 = vector.broadcast %cst_30 : f32 to vector<16x1xf32>
    %75 = arith.maximumf %73, %74 : vector<16x1xf32>
    %76 = vector.broadcast %69 : vector<16x1xf32> to vector<16x64xf32>
    %77 = arith.subf %62, %76 : vector<16x64xf32>
    %cst_31 = arith.constant 9.99999974E-6 : f32
    %78 = vector.broadcast %cst_31 : f32 to vector<16x1xf32>
    %79 = arith.addf %75, %78 : vector<16x1xf32>
    %80 = math.rsqrt %79 : vector<16x1xf32>
    %81 = vector.broadcast %80 : vector<16x1xf32> to vector<16x64xf32>
    %82 = arith.mulf %77, %81 : vector<16x64xf32>
    %83 = vector.broadcast %59 : vector<1x64xf32> to vector<16x64xf32>
    %84 = arith.mulf %82, %83 : vector<16x64xf32>
    %85 = vector.broadcast %60 : vector<1x64xf32> to vector<16x64xf32>
    %86 = arith.addf %84, %85 : vector<16x64xf32>
    %cst_32 = arith.constant 0.000000e+00 : f32
    %87 = vector.broadcast %cst_32 : f32 to vector<16x64xf32>
    %88 = arith.maximumf %86, %87 : vector<16x64xf32>
    %c96 = arith.constant 96 : index
    %c0_33 = arith.constant 0 : index
    %89 = vector.load %arg2[%c96, %c0_33] : memref<224x256xbf16, #tpu.memory_space<vmem>>, vector<64x256xbf16>
    %90 = arith.truncf %88 : vector<16x64xf32> to vector<16x64xbf16>
    %cst_34 = arith.constant dense<0.000000e+00> : vector<16x256xf32>
    %91 = tpu.matmul %90, %89, %cst_34 {dimension_numbers = #tpu.dot_dimension_numbers<[1], [0], [0], [1], [0, 0, 1, 1], [], []>} : vector<16x64xbf16>, vector<64x256xbf16>, vector<16x256xf32> -> vector<16x256xf32>
    %c70 = arith.constant 70 : index
    %c0_35 = arith.constant 0 : index
    %92 = vector.load %arg4[%c70, %c0_35] : memref<83x256xf32, #tpu.memory_space<vmem>>, vector<1x256xf32>
    %c71 = arith.constant 71 : index
    %c0_36 = arith.constant 0 : index
    %93 = vector.load %arg4[%c71, %c0_36] : memref<83x256xf32, #tpu.memory_space<vmem>>, vector<1x256xf32>
    %c72 = arith.constant 72 : index
    %c0_37 = arith.constant 0 : index
    %94 = vector.load %arg4[%c72, %c0_37] : memref<83x256xf32, #tpu.memory_space<vmem>>, vector<1x256xf32>
    %95 = vector.broadcast %92 : vector<1x256xf32> to vector<16x256xf32>
    %96 = arith.addf %91, %95 : vector<16x256xf32>
    %cst_38 = arith.constant dense<0.000000e+00> : vector<16xf32>
    %97 = vector.multi_reduction <add>, %96, %cst_38 [1] : vector<16x256xf32> to vector<16xf32>
    %98 = vector.shape_cast %97 : vector<16xf32> to vector<16x1xf32>
    %99 = arith.mulf %96, %96 : vector<16x256xf32>
    %cst_39 = arith.constant dense<0.000000e+00> : vector<16xf32>
    %100 = vector.multi_reduction <add>, %99, %cst_39 [1] : vector<16x256xf32> to vector<16xf32>
    %101 = vector.shape_cast %100 : vector<16xf32> to vector<16x1xf32>
    %cst_40 = arith.constant 3.906250e-03 : f32
    %102 = vector.broadcast %cst_40 : f32 to vector<16x1xf32>
    %103 = arith.mulf %98, %102 : vector<16x1xf32>
    %cst_41 = arith.constant 3.906250e-03 : f32
    %104 = vector.broadcast %cst_41 : f32 to vector<16x1xf32>
    %105 = arith.mulf %101, %104 : vector<16x1xf32>
    %106 = arith.mulf %103, %103 : vector<16x1xf32>
    %107 = arith.subf %105, %106 : vector<16x1xf32>
    %cst_42 = arith.constant 0.000000e+00 : f32
    %108 = vector.broadcast %cst_42 : f32 to vector<16x1xf32>
    %109 = arith.maximumf %107, %108 : vector<16x1xf32>
    %110 = vector.broadcast %103 : vector<16x1xf32> to vector<16x256xf32>
    %111 = arith.subf %96, %110 : vector<16x256xf32>
    %cst_43 = arith.constant 9.99999974E-6 : f32
    %112 = vector.broadcast %cst_43 : f32 to vector<16x1xf32>
    %113 = arith.addf %109, %112 : vector<16x1xf32>
    %114 = math.rsqrt %113 : vector<16x1xf32>
    %115 = vector.broadcast %114 : vector<16x1xf32> to vector<16x256xf32>
    %116 = arith.mulf %111, %115 : vector<16x256xf32>
    %117 = vector.broadcast %93 : vector<1x256xf32> to vector<16x256xf32>
    %118 = arith.mulf %116, %117 : vector<16x256xf32>
    %119 = vector.broadcast %94 : vector<1x256xf32> to vector<16x256xf32>
    %120 = arith.addf %118, %119 : vector<16x256xf32>
    %cst_44 = arith.constant 0.000000e+00 : f32
    %121 = vector.broadcast %cst_44 : f32 to vector<16x256xf32>
    %122 = arith.maximumf %120, %121 : vector<16x256xf32>
    %c256 = arith.constant 256 : index
    %c0_45 = arith.constant 0 : index
    %123 = vector.load %arg3[%c256, %c0_45] : memref<768x64xbf16, #tpu.memory_space<vmem>>, vector<256x64xbf16>
    %124 = arith.truncf %122 : vector<16x256xf32> to vector<16x256xbf16>
    %cst_46 = arith.constant dense<0.000000e+00> : vector<16x64xf32>
    %125 = tpu.matmul %124, %123, %cst_46 {dimension_numbers = #tpu.dot_dimension_numbers<[1], [0], [0], [1], [0, 0, 1, 1], [], []>} : vector<16x256xbf16>, vector<256x64xbf16>, vector<16x64xf32> -> vector<16x64xf32>
    %c73 = arith.constant 73 : index
    %c0_47 = arith.constant 0 : index
    %126 = vector.load %arg4[%c73, %c0_47] : memref<83x256xf32, #tpu.memory_space<vmem>>, vector<1x64xf32>
    %c74 = arith.constant 74 : index
    %c0_48 = arith.constant 0 : index
    %127 = vector.load %arg4[%c74, %c0_48] : memref<83x256xf32, #tpu.memory_space<vmem>>, vector<1x64xf32>
    %c75 = arith.constant 75 : index
    %c0_49 = arith.constant 0 : index
    %128 = vector.load %arg4[%c75, %c0_49] : memref<83x256xf32, #tpu.memory_space<vmem>>, vector<1x64xf32>
    %129 = vector.broadcast %126 : vector<1x64xf32> to vector<16x64xf32>
    %130 = arith.addf %125, %129 : vector<16x64xf32>
    %cst_50 = arith.constant dense<0.000000e+00> : vector<16xf32>
    %131 = vector.multi_reduction <add>, %130, %cst_50 [1] : vector<16x64xf32> to vector<16xf32>
    %132 = vector.shape_cast %131 : vector<16xf32> to vector<16x1xf32>
    %133 = arith.mulf %130, %130 : vector<16x64xf32>
    %cst_51 = arith.constant dense<0.000000e+00> : vector<16xf32>
    %134 = vector.multi_reduction <add>, %133, %cst_51 [1] : vector<16x64xf32> to vector<16xf32>
    %135 = vector.shape_cast %134 : vector<16xf32> to vector<16x1xf32>
    %cst_52 = arith.constant 1.562500e-02 : f32
    %136 = vector.broadcast %cst_52 : f32 to vector<16x1xf32>
    %137 = arith.mulf %132, %136 : vector<16x1xf32>
    %cst_53 = arith.constant 1.562500e-02 : f32
    %138 = vector.broadcast %cst_53 : f32 to vector<16x1xf32>
    %139 = arith.mulf %135, %138 : vector<16x1xf32>
    %140 = arith.mulf %137, %137 : vector<16x1xf32>
    %141 = arith.subf %139, %140 : vector<16x1xf32>
    %cst_54 = arith.constant 0.000000e+00 : f32
    %142 = vector.broadcast %cst_54 : f32 to vector<16x1xf32>
    %143 = arith.maximumf %141, %142 : vector<16x1xf32>
    %144 = vector.broadcast %137 : vector<16x1xf32> to vector<16x64xf32>
    %145 = arith.subf %130, %144 : vector<16x64xf32>
    %cst_55 = arith.constant 9.99999974E-6 : f32
    %146 = vector.broadcast %cst_55 : f32 to vector<16x1xf32>
    %147 = arith.addf %143, %146 : vector<16x1xf32>
    %148 = math.rsqrt %147 : vector<16x1xf32>
    %149 = vector.broadcast %148 : vector<16x1xf32> to vector<16x64xf32>
    %150 = arith.mulf %145, %149 : vector<16x64xf32>
    %151 = vector.broadcast %127 : vector<1x64xf32> to vector<16x64xf32>
    %152 = arith.mulf %150, %151 : vector<16x64xf32>
    %153 = vector.broadcast %128 : vector<1x64xf32> to vector<16x64xf32>
    %154 = arith.addf %152, %153 : vector<16x64xf32>
    %cst_56 = arith.constant 0.000000e+00 : f32
    %155 = vector.broadcast %cst_56 : f32 to vector<16x64xf32>
    %156 = arith.maximumf %154, %155 : vector<16x64xf32>
    %c160 = arith.constant 160 : index
    %c0_57 = arith.constant 0 : index
    %157 = vector.load %arg2[%c160, %c0_57] : memref<224x256xbf16, #tpu.memory_space<vmem>>, vector<64x256xbf16>
    %158 = arith.truncf %156 : vector<16x64xf32> to vector<16x64xbf16>
    %cst_58 = arith.constant dense<0.000000e+00> : vector<16x256xf32>
    %159 = tpu.matmul %158, %157, %cst_58 {dimension_numbers = #tpu.dot_dimension_numbers<[1], [0], [0], [1], [0, 0, 1, 1], [], []>} : vector<16x64xbf16>, vector<64x256xbf16>, vector<16x256xf32> -> vector<16x256xf32>
    %c76 = arith.constant 76 : index
    %c0_59 = arith.constant 0 : index
    %160 = vector.load %arg4[%c76, %c0_59] : memref<83x256xf32, #tpu.memory_space<vmem>>, vector<1x256xf32>
    %c77 = arith.constant 77 : index
    %c0_60 = arith.constant 0 : index
    %161 = vector.load %arg4[%c77, %c0_60] : memref<83x256xf32, #tpu.memory_space<vmem>>, vector<1x256xf32>
    %c78 = arith.constant 78 : index
    %c0_61 = arith.constant 0 : index
    %162 = vector.load %arg4[%c78, %c0_61] : memref<83x256xf32, #tpu.memory_space<vmem>>, vector<1x256xf32>
    %163 = vector.broadcast %160 : vector<1x256xf32> to vector<16x256xf32>
    %164 = arith.addf %159, %163 : vector<16x256xf32>
    %cst_62 = arith.constant dense<0.000000e+00> : vector<16xf32>
    %165 = vector.multi_reduction <add>, %164, %cst_62 [1] : vector<16x256xf32> to vector<16xf32>
    %166 = vector.shape_cast %165 : vector<16xf32> to vector<16x1xf32>
    %167 = arith.mulf %164, %164 : vector<16x256xf32>
    %cst_63 = arith.constant dense<0.000000e+00> : vector<16xf32>
    %168 = vector.multi_reduction <add>, %167, %cst_63 [1] : vector<16x256xf32> to vector<16xf32>
    %169 = vector.shape_cast %168 : vector<16xf32> to vector<16x1xf32>
    %cst_64 = arith.constant 3.906250e-03 : f32
    %170 = vector.broadcast %cst_64 : f32 to vector<16x1xf32>
    %171 = arith.mulf %166, %170 : vector<16x1xf32>
    %cst_65 = arith.constant 3.906250e-03 : f32
    %172 = vector.broadcast %cst_65 : f32 to vector<16x1xf32>
    %173 = arith.mulf %169, %172 : vector<16x1xf32>
    %174 = arith.mulf %171, %171 : vector<16x1xf32>
    %175 = arith.subf %173, %174 : vector<16x1xf32>
    %cst_66 = arith.constant 0.000000e+00 : f32
    %176 = vector.broadcast %cst_66 : f32 to vector<16x1xf32>
    %177 = arith.maximumf %175, %176 : vector<16x1xf32>
    %178 = vector.broadcast %171 : vector<16x1xf32> to vector<16x256xf32>
    %179 = arith.subf %164, %178 : vector<16x256xf32>
    %cst_67 = arith.constant 9.99999974E-6 : f32
    %180 = vector.broadcast %cst_67 : f32 to vector<16x1xf32>
    %181 = arith.addf %177, %180 : vector<16x1xf32>
    %182 = math.rsqrt %181 : vector<16x1xf32>
    %183 = vector.broadcast %182 : vector<16x1xf32> to vector<16x256xf32>
    %184 = arith.mulf %179, %183 : vector<16x256xf32>
    %185 = vector.broadcast %161 : vector<1x256xf32> to vector<16x256xf32>
    %186 = arith.mulf %184, %185 : vector<16x256xf32>
    %187 = vector.broadcast %162 : vector<1x256xf32> to vector<16x256xf32>
    %188 = arith.addf %186, %187 : vector<16x256xf32>
    %cst_68 = arith.constant 0.000000e+00 : f32
    %189 = vector.broadcast %cst_68 : f32 to vector<16x256xf32>
    %190 = arith.maximumf %188, %189 : vector<16x256xf32>
    %c512 = arith.constant 512 : index
    %c0_69 = arith.constant 0 : index
    %191 = vector.load %arg3[%c512, %c0_69] : memref<768x64xbf16, #tpu.memory_space<vmem>>, vector<256x64xbf16>
    %192 = arith.truncf %190 : vector<16x256xf32> to vector<16x256xbf16>
    %cst_70 = arith.constant dense<0.000000e+00> : vector<16x64xf32>
    %193 = tpu.matmul %192, %191, %cst_70 {dimension_numbers = #tpu.dot_dimension_numbers<[1], [0], [0], [1], [0, 0, 1, 1], [], []>} : vector<16x256xbf16>, vector<256x64xbf16>, vector<16x64xf32> -> vector<16x64xf32>
    %c79 = arith.constant 79 : index
    %c0_71 = arith.constant 0 : index
    %194 = vector.load %arg4[%c79, %c0_71] : memref<83x256xf32, #tpu.memory_space<vmem>>, vector<1x64xf32>
    %c80 = arith.constant 80 : index
    %c0_72 = arith.constant 0 : index
    %195 = vector.load %arg4[%c80, %c0_72] : memref<83x256xf32, #tpu.memory_space<vmem>>, vector<1x64xf32>
    %c81 = arith.constant 81 : index
    %c0_73 = arith.constant 0 : index
    %196 = vector.load %arg4[%c81, %c0_73] : memref<83x256xf32, #tpu.memory_space<vmem>>, vector<1x64xf32>
    %197 = vector.broadcast %194 : vector<1x64xf32> to vector<16x64xf32>
    %198 = arith.addf %193, %197 : vector<16x64xf32>
    %cst_74 = arith.constant dense<0.000000e+00> : vector<16xf32>
    %199 = vector.multi_reduction <add>, %198, %cst_74 [1] : vector<16x64xf32> to vector<16xf32>
    %200 = vector.shape_cast %199 : vector<16xf32> to vector<16x1xf32>
    %201 = arith.mulf %198, %198 : vector<16x64xf32>
    %cst_75 = arith.constant dense<0.000000e+00> : vector<16xf32>
    %202 = vector.multi_reduction <add>, %201, %cst_75 [1] : vector<16x64xf32> to vector<16xf32>
    %203 = vector.shape_cast %202 : vector<16xf32> to vector<16x1xf32>
    %cst_76 = arith.constant 1.562500e-02 : f32
    %204 = vector.broadcast %cst_76 : f32 to vector<16x1xf32>
    %205 = arith.mulf %200, %204 : vector<16x1xf32>
    %cst_77 = arith.constant 1.562500e-02 : f32
    %206 = vector.broadcast %cst_77 : f32 to vector<16x1xf32>
    %207 = arith.mulf %203, %206 : vector<16x1xf32>
    %208 = arith.mulf %205, %205 : vector<16x1xf32>
    %209 = arith.subf %207, %208 : vector<16x1xf32>
    %cst_78 = arith.constant 0.000000e+00 : f32
    %210 = vector.broadcast %cst_78 : f32 to vector<16x1xf32>
    %211 = arith.maximumf %209, %210 : vector<16x1xf32>
    %212 = vector.broadcast %205 : vector<16x1xf32> to vector<16x64xf32>
    %213 = arith.subf %198, %212 : vector<16x64xf32>
    %cst_79 = arith.constant 9.99999974E-6 : f32
    %214 = vector.broadcast %cst_79 : f32 to vector<16x1xf32>
    %215 = arith.addf %211, %214 : vector<16x1xf32>
    %216 = math.rsqrt %215 : vector<16x1xf32>
    %217 = vector.broadcast %216 : vector<16x1xf32> to vector<16x64xf32>
    %218 = arith.mulf %213, %217 : vector<16x64xf32>
    %219 = vector.broadcast %195 : vector<1x64xf32> to vector<16x64xf32>
    %220 = arith.mulf %218, %219 : vector<16x64xf32>
    %221 = vector.broadcast %196 : vector<1x64xf32> to vector<16x64xf32>
    %222 = arith.addf %220, %221 : vector<16x64xf32>
    %cst_80 = arith.constant 0.000000e+00 : f32
    %223 = vector.broadcast %cst_80 : f32 to vector<16x64xf32>
    %224 = arith.maximumf %222, %223 : vector<16x64xf32>
    %c0_81 = arith.constant 0 : index
    %c0_82 = arith.constant 0 : index
    %225 = vector.load %arg1[%c0_81, %c0_82] : memref<2x16xf32, #tpu.memory_space<vmem>>, vector<2x16xf32>
    %cst_83 = arith.constant dense<0.000000e+00> : vector<2x64xf32>
    %226 = tpu.matmul %225, %224, %cst_83 {dimension_numbers = #tpu.dot_dimension_numbers<[1], [0], [0], [1], [0, 0, 1, 1], [], []>} : vector<2x16xf32>, vector<16x64xf32>, vector<2x64xf32> -> vector<2x64xf32>
    %c0_84 = arith.constant 0 : index
    %c0_85 = arith.constant 0 : index
    %227 = vector.load %arg4[%c0_84, %c0_85] : memref<83x256xf32, #tpu.memory_space<vmem>>, vector<64x256xf32>
    %c82 = arith.constant 82 : index
    %c0_86 = arith.constant 0 : index
    %228 = vector.load %arg4[%c82, %c0_86] : memref<83x256xf32, #tpu.memory_space<vmem>>, vector<1x256xf32>
    %cst_87 = arith.constant dense<0.000000e+00> : vector<2x256xf32>
    %229 = tpu.matmul %226, %227, %cst_87 {dimension_numbers = #tpu.dot_dimension_numbers<[1], [0], [0], [1], [0, 0, 1, 1], [], []>} : vector<2x64xf32>, vector<64x256xf32>, vector<2x256xf32> -> vector<2x256xf32>
    %230 = vector.broadcast %228 : vector<1x256xf32> to vector<2x256xf32>
    %231 = arith.addf %229, %230 : vector<2x256xf32>
    %c0_88 = arith.constant 0 : index
    %c0_89 = arith.constant 0 : index
    %232 = vector.load %arg5[%c0_88, %c0_89] : memref<2x256xf32, #tpu.memory_space<vmem>>, vector<2x256xf32>
    tpu.vector_store %arg5[%c0_88, %c0_89], %231 {strides = array<i32>} : memref<2x256xf32, #tpu.memory_space<vmem>>, vector<2x256xf32>,
    return
  }
}

</mosaic_0001>

<llo_original>
// kernel: linear_net_forward.1
$region0: #{linear_net_forward.1}
  #allocation0 [shape = 'u32[]', space=smem, size = 0x4, offset = 0x4, fixed_abs, tag = 'smem constant byte address 0x4 - core index']
  #allocation1 [shape = 'u32[144,128]{1,0:T(1,128)}', space=vmem, size = 0x12000, scoped, tag = 'internal scratch']
  %s0 = inlined_call_operand.vmem [shape: f32[16,16], index: 0, kind: input, shape index: {}]
  %s1 = inlined_call_operand.vmem [shape: f32[2,16], index: 1, kind: input, shape index: {}]
  %s2 = inlined_call_operand.vmem [shape: bf16[224,256], index: 2, kind: input, shape index: {}]
  %s3 = inlined_call_operand.vmem [shape: bf16[768,64], index: 3, kind: input, shape index: {}]
  %s4 = inlined_call_operand.vmem [shape: f32[83,256], index: 4, kind: input, shape index: {}]
  %s5 = inlined_call_operand.vmem [shape: f32[2,256], index: 5, kind: output, shape index: {}]
  %s6 = sld [smem:[#allocation0]]
  $region30: #{linear_net_forward.1} parent=0
    _
  %s8 = ssub.s32 1, %s6
  %s9 = scalar_select 0, %s8, %s6
  // Predicated region
  $region2: #{linear_net_forward.1} parent=0 // pred_check
    _
  $region3: #{linear_net_forward.1} parent=0 // pred_check_branch
    %11 = sbr.rel (0) target = $region5
  $region4: #{linear_net_forward.1} parent=0 // pred_region
    _
  $region5: #{linear_net_forward.1} parent=0 // pred_fallthru
    _
  // Predicated region
  $region6: #{linear_net_forward.1} parent=0 // pred_check
    _
  $region7: #{linear_net_forward.1} parent=0 // pred_check_branch
    %13 = sbr.rel (0) target = $region9
  $region8: #{linear_net_forward.1} parent=0 // pred_region
    _
  $region9: #{linear_net_forward.1} parent=0 // pred_fallthru
    _
  // Predicated region
  $region10: #{linear_net_forward.1} parent=0 // pred_check
    _
  $region11: #{linear_net_forward.1} parent=0 // pred_check_branch
    %15 = sbr.rel (0) target = $region13
  $region12: #{linear_net_forward.1} parent=0 // pred_region
    _
  $region13: #{linear_net_forward.1} parent=0 // pred_fallthru
    _
  // Predicated region
  $region14: #{linear_net_forward.1} parent=0 // pred_check
    _
  $region15: #{linear_net_forward.1} parent=0 // pred_check_branch
    %17 = sbr.rel (0) target = $region17
  $region16: #{linear_net_forward.1} parent=0 // pred_region
    _
  $region17: #{linear_net_forward.1} parent=0 // pred_fallthru
    _
  // Predicated region
  $region18: #{linear_net_forward.1} parent=0 // pred_check
    _
  $region19: #{linear_net_forward.1} parent=0 // pred_check_branch
    %19 = sbr.rel (0) target = $region21
  $region20: #{linear_net_forward.1} parent=0 // pred_region
    _
  $region21: #{linear_net_forward.1} parent=0 // pred_fallthru
    _
  %v21 = vld [vmem:[%s0] sm:$0xff]
  %v22 = vld [vmem:[%s0 + $0x8] sm:$0xff]
  %v23 = vmul.f32 %v21, 0.2631579
  %v24 = vmul.f32 %v22, 0.2631579
  %v25 = vmul.f32 %v23, %v23
  %v26 = vmul.f32 %v24, %v24
  %v27 = vmul.f32 %v25, %v23
  %v28 = vmul.f32 %v26, %v24
  %v29 = vadd.f32 %v23, 0.33333334
  %v30 = vadd.f32 %v24, 0.33333334
  %v31 = vrcp.pop %v29
  %v32 = vrcp.pop %v30
  %v33 = vmul.f32 %v31, 1.3333334
  %v34 = vmul.f32 %v32, 1.3333334
  %v35 = vadd.f32 %v25, 0.33333334
  %v36 = vadd.f32 %v26, 0.33333334
  %v37 = vrcp.pop %v35
  %v38 = vrcp.pop %v36
  %v39 = vmul.f32 %v37, 1.3333334
  %v40 = vmul.f32 %v38, 1.3333334
  %v41 = vadd.f32 %v27, 0.33333334
  %v42 = vadd.f32 %v28, 0.33333334
  %v43 = vrcp.pop %v41
  %v44 = vrcp.pop %v42
  %v45 = vmul.f32 %v43, 1.3333334
  %v46 = vmul.f32 %v44, 1.3333334
  %49 = vrot.lane.b32.xlu0 %v25, 16
  %v50 = vpop.permute.xlu0 %49
  %51 = vrot.lane.b32.xlu0 %v26, 16
  %v52 = vpop.permute.xlu0 %51
  %57 = vrot.lane.b32.xlu0 %v27, 32
  %v58 = vpop.permute.xlu0 %57
  %59 = vrot.lane.b32.xlu0 %v28, 32
  %v60 = vpop.permute.xlu0 %59
  %65 = vrot.lane.b32.xlu0 %v33, 48
  %v66 = vpop.permute.xlu0 %65
  %67 = vrot.lane.b32.xlu0 %v34, 48
  %v68 = vpop.permute.xlu0 %67
  %73 = vrot.lane.b32.xlu0 %v39, 64
  %v74 = vpop.permute.xlu0 %73
  %75 = vrot.lane.b32.xlu0 %v40, 64
  %v76 = vpop.permute.xlu0 %75
  %81 = vrot.lane.b32.xlu0 %v45, 80
  %v82 = vpop.permute.xlu0 %81
  %83 = vrot.lane.b32.xlu0 %v46, 80
  %v84 = vpop.permute.xlu0 %83
  %vm87 = vcmask 130048
  %v88 = vsel %vm87, %v23, %v50
  %v89 = vsel %vm87, %v24, %v52
  %vm90 = vcmask 261120
  %v91 = vsel %vm90, %v88, %v58
  %v92 = vsel %vm90, %v89, %v60
  %vm93 = vcmask 392192
  %v94 = vsel %vm93, %v91, %v66
  %v95 = vsel %vm93, %v92, %v68
  %vm96 = vcmask 523264
  %v97 = vsel %vm96, %v94, %v74
  %v98 = vsel %vm96, %v95, %v76
  %vm99 = vcmask 654336
  %v100 = vsel %vm99, %v97, %v82
  %v101 = vsel %vm99, %v98, %v84
  %v102 = vld [vmem:[%s2] sm:$0xff]
  %v103 = vld [vmem:[%s2 + $0x8] sm:$0xff]
  %v104 = vld [vmem:[%s2 + $0x10] sm:$0xff]
  %v105 = vld [vmem:[%s2 + $0x18] sm:$0xff]
  %v106 = vld [vmem:[%s2 + $0x20] sm:$0xff]
  %v107 = vld [vmem:[%s2 + $0x28] sm:$0xff]
  %v108 = vld [vmem:[%s2 + $0x30] sm:$0xff]
  %v109 = vld [vmem:[%s2 + $0x38] sm:$0xff]
  %v110 = vld [vmem:[%s2 + $0x40] sm:$0xff]
  %v111 = vld [vmem:[%s2 + $0x48] sm:$0xff]
  %v112 = vld [vmem:[%s2 + $0x50] sm:$0xff]
  %v113 = vld [vmem:[%s2 + $0x58] sm:$0xff]
  %v114 = vpack.c.bf16 %v101, %v100
  %s115 = scalar_lea.vmem %s4, 128
  %v116 = vld [vmem:[%s115] ss:$8 sm:$0x3]
  %s117 = scalar_lea.vmem %s4, 129
  %v118 = vld [vmem:[%s117] ss:$8 sm:$0x3]
  %s119 = scalar_lea.vmem %s4, 130
  %v120 = vld [vmem:[%s119] ss:$8 sm:$0x3]
  %v122 = vlaneseq
  %v123 = vshrl.u32 %v122, 7
  %v124 = vsub.s32 0, %v123
  %v125 = vrot.slane %v116, %v124
  %v126 = vlaneseq
  %v127 = vshrl.u32 %v126, 7
  %v128 = vsub.s32 1, %v127
  %v129 = vrot.slane %v116, %v128
  %v144 = vunpack.c.l.b16 %v102
  %v145 = vunpack.c.h.b16 %v102
  %v146 = vunpack.c.l.b16 %v103
  %v147 = vunpack.c.h.b16 %v103
  %v148 = vunpack.c.l.b16 %v104
  %v149 = vunpack.c.h.b16 %v104
  %v150 = vunpack.c.l.b16 %v105
  %v151 = vunpack.c.h.b16 %v105
  %v152 = vunpack.c.l.b16 %v106
  %v153 = vunpack.c.h.b16 %v106
  %v154 = vunpack.c.l.b16 %v107
  %v155 = vunpack.c.h.b16 %v107
  %v156 = vunpack.c.l.b16 %v108
  %v157 = vunpack.c.h.b16 %v108
  %v158 = vunpack.c.l.b16 %v109
  %v159 = vunpack.c.h.b16 %v109
  %v160 = vunpack.c.l.b16 %v110
  %v161 = vunpack.c.h.b16 %v110
  %v162 = vunpack.c.l.b16 %v111
  %v163 = vunpack.c.h.b16 %v111
  %v164 = vunpack.c.l.b16 %v112
  %v165 = vunpack.c.h.b16 %v112
  %v166 = vunpack.c.l.b16 %v113
  %v167 = vunpack.c.h.b16 %v113
  %v168 = vpack.c.b16 %v146, %v144
  %v169 = vpack.c.b16 %v147, %v145
  %v170 = vpack.c.b16 %v150, %v148
  %v171 = vpack.c.b16 %v151, %v149
  %v172 = vpack.c.b16 %v154, %v152
  %v173 = vpack.c.b16 %v155, %v153
  %v174 = vpack.c.b16 %v158, %v156
  %v175 = vpack.c.b16 %v159, %v157
  %v176 = vpack.c.b16 %v162, %v160
  %v177 = vpack.c.b16 %v163, %v161
  %v178 = vpack.c.b16 %v166, %v164
  %v179 = vpack.c.b16 %v167, %v165
  %vm192 = vcmask 785408
  %v194 = vsel %vm192, %v114, 0
  %196 = vmatprep.subr.bf16.mxu0 0
  %197 = vmatpush1.bf16.msra.mxu0 0
  %198 = vmatprep.subr.bf16.mxu0 0
  %199 = vmatpush1.bf16.msra.mxu0 0
  %200 = vmatprep.subr.bf16.mxu0 %v179
  %201 = vmatpush1.bf16.msra.mxu0 %v178
  %202 = vmatprep.subr.bf16.mxu0 %v177
  %203 = vmatpush1.bf16.msra.mxu0 %v176
  %204 = vmatprep.subr.bf16.mxu0 %v175
  %205 = vmatpush1.bf16.msra.mxu0 %v174
  %206 = vmatprep.subr.bf16.mxu0 %v173
  %207 = vmatpush1.bf16.msra.mxu0 %v172
  %208 = vmatprep.subr.bf16.mxu0 %v171
  %209 = vmatpush1.bf16.msra.mxu0 %v170
  %210 = vmatprep.subr.bf16.mxu0 %v169
  %211 = vmatpush1.bf16.msra.mxu0 %v168
  %212 = vmatprep.subr.bf16.mxu0 0
  %213 = vmatpush2.bf16.msra.mxu0 0
  %214 = vmatprep.subr.bf16.mxu0 0
  %215 = vmatpush2.bf16.msra.mxu0 0
  %216 = vmatprep.subr.bf16.mxu0 0
  %217 = vmatpush2.bf16.msra.mxu0 0
  %218 = vmatprep.subr.bf16.mxu0 0
  %219 = vmatpush2.bf16.msra.mxu0 0
  %220 = vmatprep.subr.bf16.mxu0 0
  %221 = vmatpush2.bf16.msra.mxu0 0
  %222 = vmatprep.subr.bf16.mxu0 0
  %223 = vmatpush2.bf16.msra.mxu0 0
  %224 = vmatprep.subr.bf16.mxu0 0
  %225 = vmatpush2.bf16.msra.mxu0 0
  %226 = vmatprep.subr.bf16.mxu0 0
  %227 = vmatpush2.bf16.msra.mxu0 0
  %228 = vmatprep.mubr.bf16.mxu0 0
  %229 = vmatmul.mubr.bf16.gmra.mxu0 %v194
  %v230 = vpop.f32.mrf.mxu0
  %v231 = vadd.f32 %v125, %v230
  %v232 = vpop.f32.mrf.mxu0
  %v233 = vadd.f32 %v129, %v232
  %v234 = vpop.f32.mrf.mxu0
  %v235 = vadd.f32 %v125, %v234
  %v236 = vpop.f32.mrf.mxu0
  %v237 = vadd.f32 %v129, %v236
  %238 = vdwg.mxu0
  %v239 = vadd.f32 %v231, %v233
  %240 = vadd.xlane.f32.xlu0 %v239
  %v241 = vpop.xlane.xlu0 %240
  %v242 = vadd.f32 %v235, %v237
  %243 = vadd.xlane.f32.xlu0 %v242
  %v244 = vpop.xlane.xlu0 %243
  %v245 = vmul.f32 %v231, %v231
  %v246 = vmul.f32 %v233, %v233
  %v247 = vmul.f32 %v235, %v235
  %v248 = vmul.f32 %v237, %v237
  %v249 = vadd.f32 %v245, %v246
  %250 = vadd.xlane.f32.xlu0 %v249
  %v251 = vpop.xlane.xlu0 %250
  %v252 = vadd.f32 %v247, %v248
  %253 = vadd.xlane.f32.xlu0 %v252
  %v254 = vpop.xlane.xlu0 %253
  %v255 = vmul.f32 %v241, 0.00390625
  %v256 = vmul.f32 %v244, 0.00390625
  %v257 = vmul.f32 %v251, 0.00390625
  %v258 = vmul.f32 %v254, 0.00390625
  %v259 = vmul.f32 %v255, %v255
  %v260 = vmul.f32 %v256, %v256
  %v261 = vsub.f32 %v257, %v259
  %v262 = vsub.f32 %v258, %v260
  %v263 = vmax.f32 %v261, 0.0
  %v264 = vmax.f32 %v262, 0.0
  %v265 = vsub.f32 %v231, %v255
  %v266 = vsub.f32 %v233, %v255
  %v267 = vsub.f32 %v235, %v256
  %v268 = vsub.f32 %v237, %v256
  %v269 = vadd.f32 %v263, 1e-05
  %v270 = vadd.f32 %v264, 1e-05
  %v271 = vrsqrt.pop %v269
  %v272 = vrsqrt.pop %v270
  %v273 = vmul.f32 %v265, %v271
  %v274 = vmul.f32 %v266, %v271
  %v275 = vmul.f32 %v267, %v272
  %v276 = vmul.f32 %v268, %v272
  %v278 = vlaneseq
  %v279 = vshrl.u32 %v278, 7
  %v280 = vsub.s32 0, %v279
  %v281 = vrot.slane %v118, %v280
  %v282 = vlaneseq
  %v283 = vshrl.u32 %v282, 7
  %v284 = vsub.s32 1, %v283
  %v285 = vrot.slane %v118, %v284
  %v288 = vmul.f32 %v273, %v281
  %v289 = vmul.f32 %v274, %v285
  %v290 = vmul.f32 %v275, %v281
  %v291 = vmul.f32 %v276, %v285
  %v293 = vlaneseq
  %v294 = vshrl.u32 %v293, 7
  %v295 = vsub.s32 0, %v294
  %v296 = vrot.slane %v120, %v295
  %v297 = vlaneseq
  %v298 = vshrl.u32 %v297, 7
  %v299 = vsub.s32 1, %v298
  %v300 = vrot.slane %v120, %v299
  %v303 = vadd.f32 %v288, %v296
  %v304 = vadd.f32 %v289, %v300
  %v305 = vadd.f32 %v290, %v296
  %v306 = vadd.f32 %v291, %v300
  %v307 = vmax.f32 %v303, 0.0
  %v308 = vmax.f32 %v304, 0.0
  %v309 = vmax.f32 %v305, 0.0
  %v310 = vmax.f32 %v306, 0.0
  %v311 = vld [vmem:[%s3] sm:$0xf]
  %v312 = vld [vmem:[%s3 + $0x4] sm:$0xf]
  %v313 = vld [vmem:[%s3 + $0x8] sm:$0xf]
  %v314 = vld [vmem:[%s3 + $0xc] sm:$0xf]
  %v315 = vld [vmem:[%s3 + $0x10] sm:$0xf]
  %v316 = vld [vmem:[%s3 + $0x14] sm:$0xf]
  %v317 = vld [vmem:[%s3 + $0x18] sm:$0xf]
  %v318 = vld [vmem:[%s3 + $0x1c] sm:$0xf]
  %v319 = vld [vmem:[%s3 + $0x20] sm:$0xf]
  %v320 = vld [vmem:[%s3 + $0x24] sm:$0xf]
  %v321 = vld [vmem:[%s3 + $0x28] sm:$0xf]
  %v322 = vld [vmem:[%s3 + $0x2c] sm:$0xf]
  %v323 = vld [vmem:[%s3 + $0x30] sm:$0xf]
  %v324 = vld [vmem:[%s3 + $0x34] sm:$0xf]
  %v325 = vld [vmem:[%s3 + $0x38] sm:$0xf]
  %v326 = vld [vmem:[%s3 + $0x3c] sm:$0xf]
  %v327 = vld [vmem:[%s3 + $0x40] sm:$0xf]
  %v328 = vld [vmem:[%s3 + $0x44] sm:$0xf]
  %v329 = vld [vmem:[%s3 + $0x48] sm:$0xf]
  %v330 = vld [vmem:[%s3 + $0x4c] sm:$0xf]
  %v331 = vld [vmem:[%s3 + $0x50] sm:$0xf]
  %v332 = vld [vmem:[%s3 + $0x54] sm:$0xf]
  %v333 = vld [vmem:[%s3 + $0x58] sm:$0xf]
  %v334 = vld [vmem:[%s3 + $0x5c] sm:$0xf]
  %v335 = vld [vmem:[%s3 + $0x60] sm:$0xf]
  %v336 = vld [vmem:[%s3 + $0x64] sm:$0xf]
  %v337 = vld [vmem:[%s3 + $0x68] sm:$0xf]
  %v338 = vld [vmem:[%s3 + $0x6c] sm:$0xf]
  %v339 = vld [vmem:[%s3 + $0x70] sm:$0xf]
  %v340 = vld [vmem:[%s3 + $0x74] sm:$0xf]
  %v341 = vld [vmem:[%s3 + $0x78] sm:$0xf]
  %v342 = vld [vmem:[%s3 + $0x7c] sm:$0xf]
  %v343 = vpack.c.bf16 %v309, %v307
  %v344 = vpack.c.bf16 %v310, %v308
  %v345 = vld [vmem:[%s4 + $0x83] ss:$0 sm:$0xff]
  %v346 = vld [vmem:[%s4 + $0x84] ss:$0 sm:$0xff]
  %v347 = vld [vmem:[%s4 + $0x85] ss:$0 sm:$0xff]
  %v380 = vunpack.c.l.b16 %v311
  %v381 = vunpack.c.l.b16 %v312
  %v382 = vunpack.c.l.b16 %v313
  %v383 = vunpack.c.l.b16 %v314
  %v384 = vunpack.c.l.b16 %v315
  %v385 = vunpack.c.l.b16 %v316
  %v386 = vunpack.c.l.b16 %v317
  %v387 = vunpack.c.l.b16 %v318
  %v388 = vunpack.c.l.b16 %v319
  %v389 = vunpack.c.l.b16 %v320
  %v390 = vunpack.c.l.b16 %v321
  %v391 = vunpack.c.l.b16 %v322
  %v392 = vunpack.c.l.b16 %v323
  %v393 = vunpack.c.l.b16 %v324
  %v394 = vunpack.c.l.b16 %v325
  %v395 = vunpack.c.l.b16 %v326
  %v396 = vunpack.c.l.b16 %v327
  %v397 = vunpack.c.l.b16 %v328
  %v398 = vunpack.c.l.b16 %v329
  %v399 = vunpack.c.l.b16 %v330
  %v400 = vunpack.c.l.b16 %v331
  %v401 = vunpack.c.l.b16 %v332
  %v402 = vunpack.c.l.b16 %v333
  %v403 = vunpack.c.l.b16 %v334
  %v404 = vunpack.c.l.b16 %v335
  %v405 = vunpack.c.l.b16 %v336
  %v406 = vunpack.c.l.b16 %v337
  %v407 = vunpack.c.l.b16 %v338
  %v408 = vunpack.c.l.b16 %v339
  %v409 = vunpack.c.l.b16 %v340
  %v410 = vunpack.c.l.b16 %v341
  %v411 = vunpack.c.l.b16 %v342
  %v412 = vpack.c.b16 %v381, %v380
  %v413 = vpack.c.b16 %v383, %v382
  %v414 = vpack.c.b16 %v385, %v384
  %v415 = vpack.c.b16 %v387, %v386
  %v416 = vpack.c.b16 %v389, %v388
  %v417 = vpack.c.b16 %v391, %v390
  %v418 = vpack.c.b16 %v393, %v392
  %v419 = vpack.c.b16 %v395, %v394
  %v420 = vpack.c.b16 %v397, %v396
  %v421 = vpack.c.b16 %v399, %v398
  %v422 = vpack.c.b16 %v401, %v400
  %v423 = vpack.c.b16 %v403, %v402
  %v424 = vpack.c.b16 %v405, %v404
  %v425 = vpack.c.b16 %v407, %v406
  %v426 = vpack.c.b16 %v409, %v408
  %v427 = vpack.c.b16 %v411, %v410
  %444 = vmatprep.subr.bf16.mxu0 0
  %445 = vmatpush1.bf16.msra.mxu0 %v419
  %446 = vmatprep.subr.bf16.mxu0 0
  %447 = vmatpush1.bf16.msra.mxu0 %v418
  %448 = vmatprep.subr.bf16.mxu0 0
  %449 = vmatpush1.bf16.msra.mxu0 %v417
  %450 = vmatprep.subr.bf16.mxu0 0
  %451 = vmatpush1.bf16.msra.mxu0 %v416
  %452 = vmatprep.subr.bf16.mxu0 0
  %453 = vmatpush1.bf16.msra.mxu0 %v415
  %454 = vmatprep.subr.bf16.mxu0 0
  %455 = vmatpush1.bf16.msra.mxu0 %v414
  %456 = vmatprep.subr.bf16.mxu0 0
  %457 = vmatpush1.bf16.msra.mxu0 %v413
  %458 = vmatprep.subr.bf16.mxu0 0
  %459 = vmatpush1.bf16.msra.mxu0 %v412
  %460 = vmatprep.subr.bf16.mxu0 0
  %461 = vmatpush2.bf16.msra.mxu0 %v427
  %462 = vmatprep.subr.bf16.mxu0 0
  %463 = vmatpush2.bf16.msra.mxu0 %v426
  %464 = vmatprep.subr.bf16.mxu0 0
  %465 = vmatpush2.bf16.msra.mxu0 %v425
  %466 = vmatprep.subr.bf16.mxu0 0
  %467 = vmatpush2.bf16.msra.mxu0 %v424
  %468 = vmatprep.subr.bf16.mxu0 0
  %469 = vmatpush2.bf16.msra.mxu0 %v423
  %470 = vmatprep.subr.bf16.mxu0 0
  %471 = vmatpush2.bf16.msra.mxu0 %v422
  %472 = vmatprep.subr.bf16.mxu0 0
  %473 = vmatpush2.bf16.msra.mxu0 %v421
  %474 = vmatprep.subr.bf16.mxu0 0
  %475 = vmatpush2.bf16.msra.mxu0 %v420
  %476 = vmatprep.mubr.bf16.mxu0 %v344
  %477 = vmatmul.mubr.bf16.gmra.mxu0 %v343
  %v478 = vpop.f32.mrf.mxu0
  %v479 = vadd.f32 %v345, %v478
  %v480 = vpop.f32.mrf.mxu0
  %v481 = vpop.f32.mrf.mxu0
  %v482 = vadd.f32 %v345, %v481
  %v483 = vpop.f32.mrf.mxu0
  %484 = vdwg.mxu0
  %v485 = vsel %vm96, %v479, 0.0
  %486 = vadd.xlane.f32.xlu0 %v485
  %v487 = vpop.xlane.xlu0 %486
  %v488 = vsel %vm96, %v482, 0.0
  %489 = vadd.xlane.f32.xlu0 %v488
  %v490 = vpop.xlane.xlu0 %489
  %v491 = vmul.f32 %v479, %v479
  %v492 = vmul.f32 %v482, %v482
  %v493 = vsel %vm96, %v491, 0.0
  %494 = vadd.xlane.f32.xlu0 %v493
  %v495 = vpop.xlane.xlu0 %494
  %v496 = vsel %vm96, %v492, 0.0
  %497 = vadd.xlane.f32.xlu0 %v496
  %v498 = vpop.xlane.xlu0 %497
  %v499 = vmul.f32 %v487, 0.015625
  %v500 = vmul.f32 %v490, 0.015625
  %v501 = vmul.f32 %v495, 0.015625
  %v502 = vmul.f32 %v498, 0.015625
  %v503 = vmul.f32 %v499, %v499
  %v504 = vmul.f32 %v500, %v500
  %v505 = vsub.f32 %v501, %v503
  %v506 = vsub.f32 %v502, %v504
  %v507 = vmax.f32 %v505, 0.0
  %v508 = vmax.f32 %v506, 0.0
  %v509 = vsub.f32 %v479, %v499
  %v510 = vsub.f32 %v482, %v500
  %v511 = vadd.f32 %v507, 1e-05
  %v512 = vadd.f32 %v508, 1e-05
  %v513 = vrsqrt.pop %v511
  %v514 = vrsqrt.pop %v512
  %v515 = vmul.f32 %v509, %v513
  %v516 = vmul.f32 %v510, %v514
  %v517 = vmul.f32 %v515, %v346
  %v518 = vmul.f32 %v516, %v346
  %v519 = vadd.f32 %v517, %v347
  %v520 = vadd.f32 %v518, %v347
  %v521 = vmax.f32 %v519, 0.0
  %v522 = vmax.f32 %v520, 0.0
  %v523 = vld [vmem:[%s2 + $0x60] sm:$0xff]
  %v524 = vld [vmem:[%s2 + $0x68] sm:$0xff]
  %v525 = vld [vmem:[%s2 + $0x70] sm:$0xff]
  %v526 = vld [vmem:[%s2 + $0x78] sm:$0xff]
  %v527 = vld [vmem:[%s2 + $0x80] sm:$0xff]
  %v528 = vld [vmem:[%s2 + $0x88] sm:$0xff]
  %v529 = vld [vmem:[%s2 + $0x90] sm:$0xff]
  %v530 = vld [vmem:[%s2 + $0x98] sm:$0xff]
  %v531 = vpack.c.bf16 %v522, %v521
  %s532 = scalar_lea.vmem %s4, 134
  %v533 = vld [vmem:[%s532] ss:$8 sm:$0x3]
  %s534 = scalar_lea.vmem %s4, 135
  %v535 = vld [vmem:[%s534] ss:$8 sm:$0x3]
  %s536 = scalar_lea.vmem %s4, 144
  %v537 = vld [vmem:[%s536] ss:$8 sm:$0x3]
  %v539 = vlaneseq
  %v540 = vshrl.u32 %v539, 7
  %v541 = vsub.s32 0, %v540
  %v542 = vrot.slane %v533, %v541
  %v543 = vlaneseq
  %v544 = vshrl.u32 %v543, 7
  %v545 = vsub.s32 1, %v544
  %v546 = vrot.slane %v533, %v545
  %v557 = vunpack.c.l.b16 %v523
  %v558 = vunpack.c.h.b16 %v523
  %v559 = vunpack.c.l.b16 %v524
  %v560 = vunpack.c.h.b16 %v524
  %v561 = vunpack.c.l.b16 %v525
  %v562 = vunpack.c.h.b16 %v525
  %v563 = vunpack.c.l.b16 %v526
  %v564 = vunpack.c.h.b16 %v526
  %v565 = vunpack.c.l.b16 %v527
  %v566 = vunpack.c.h.b16 %v527
  %v567 = vunpack.c.l.b16 %v528
  %v568 = vunpack.c.h.b16 %v528
  %v569 = vunpack.c.l.b16 %v529
  %v570 = vunpack.c.h.b16 %v529
  %v571 = vunpack.c.l.b16 %v530
  %v572 = vunpack.c.h.b16 %v530
  %v573 = vpack.c.b16 %v559, %v557
  %v574 = vpack.c.b16 %v560, %v558
  %v575 = vpack.c.b16 %v563, %v561
  %v576 = vpack.c.b16 %v564, %v562
  %v577 = vpack.c.b16 %v567, %v565
  %v578 = vpack.c.b16 %v568, %v566
  %v579 = vpack.c.b16 %v571, %v569
  %v580 = vpack.c.b16 %v572, %v570
  %v590 = vsel %vm96, %v531, 0
  %592 = vmatprep.subr.bf16.mxu0 0
  %593 = vmatpush1.bf16.msra.mxu0 0
  %594 = vmatprep.subr.bf16.mxu0 0
  %595 = vmatpush1.bf16.msra.mxu0 0
  %596 = vmatprep.subr.bf16.mxu0 0
  %597 = vmatpush1.bf16.msra.mxu0 0
  %598 = vmatprep.subr.bf16.mxu0 0
  %599 = vmatpush1.bf16.msra.mxu0 0
  %600 = vmatprep.subr.bf16.mxu0 %v580
  %601 = vmatpush1.bf16.msra.mxu0 %v579
  %602 = vmatprep.subr.bf16.mxu0 %v578
  %603 = vmatpush1.bf16.msra.mxu0 %v577
  %604 = vmatprep.subr.bf16.mxu0 %v576
  %605 = vmatpush1.bf16.msra.mxu0 %v575
  %606 = vmatprep.subr.bf16.mxu0 %v574
  %607 = vmatpush1.bf16.msra.mxu0 %v573
  %608 = vmatprep.subr.bf16.mxu0 0
  %609 = vmatpush2.bf16.msra.mxu0 0
  %610 = vmatprep.subr.bf16.mxu0 0
  %611 = vmatpush2.bf16.msra.mxu0 0
  %612 = vmatprep.subr.bf16.mxu0 0
  %613 = vmatpush2.bf16.msra.mxu0 0
  %614 = vmatprep.subr.bf16.mxu0 0
  %615 = vmatpush2.bf16.msra.mxu0 0
  %616 = vmatprep.subr.bf16.mxu0 0
  %617 = vmatpush2.bf16.msra.mxu0 0
  %618 = vmatprep.subr.bf16.mxu0 0
  %619 = vmatpush2.bf16.msra.mxu0 0
  %620 = vmatprep.subr.bf16.mxu0 0
  %621 = vmatpush2.bf16.msra.mxu0 0
  %622 = vmatprep.subr.bf16.mxu0 0
  %623 = vmatpush2.bf16.msra.mxu0 0
  %624 = vmatprep.mubr.bf16.mxu0 0
  %625 = vmatmul.mubr.bf16.gmra.mxu0 %v590
  %v626 = vpop.f32.mrf.mxu0
  %v627 = vadd.f32 %v542, %v626
  %v628 = vpop.f32.mrf.mxu0
  %v629 = vadd.f32 %v546, %v628
  %v630 = vpop.f32.mrf.mxu0
  %v631 = vadd.f32 %v542, %v630
  %v632 = vpop.f32.mrf.mxu0
  %v633 = vadd.f32 %v546, %v632
  %634 = vdwg.mxu0
  %v635 = vadd.f32 %v627, %v629
  %636 = vadd.xlane.f32.xlu0 %v635
  %v637 = vpop.xlane.xlu0 %636
  %v638 = vadd.f32 %v631, %v633
  %639 = vadd.xlane.f32.xlu0 %v638
  %v640 = vpop.xlane.xlu0 %639
  %v641 = vmul.f32 %v627, %v627
  %v642 = vmul.f32 %v629, %v629
  %v643 = vmul.f32 %v631, %v631
  %v644 = vmul.f32 %v633, %v633
  %v645 = vadd.f32 %v641, %v642
  %646 = vadd.xlane.f32.xlu0 %v645
  %v647 = vpop.xlane.xlu0 %646
  %v648 = vadd.f32 %v643, %v644
  %649 = vadd.xlane.f32.xlu0 %v648
  %v650 = vpop.xlane.xlu0 %649
  %v651 = vmul.f32 %v637, 0.00390625
  %v652 = vmul.f32 %v640, 0.00390625
  %v653 = vmul.f32 %v647, 0.00390625
  %v654 = vmul.f32 %v650, 0.00390625
  %v655 = vmul.f32 %v651, %v651
  %v656 = vmul.f32 %v652, %v652
  %v657 = vsub.f32 %v653, %v655
  %v658 = vsub.f32 %v654, %v656
  %v659 = vmax.f32 %v657, 0.0
  %v660 = vmax.f32 %v658, 0.0
  %v661 = vsub.f32 %v627, %v651
  %v662 = vsub.f32 %v629, %v651
  %v663 = vsub.f32 %v631, %v652
  %v664 = vsub.f32 %v633, %v652
  %v665 = vadd.f32 %v659, 1e-05
  %v666 = vadd.f32 %v660, 1e-05
  %v667 = vrsqrt.pop %v665
  %v668 = vrsqrt.pop %v666
  %v669 = vmul.f32 %v661, %v667
  %v670 = vmul.f32 %v662, %v667
  %v671 = vmul.f32 %v663, %v668
  %v672 = vmul.f32 %v664, %v668
  %v674 = vlaneseq
  %v675 = vshrl.u32 %v674, 7
  %v676 = vsub.s32 0, %v675
  %v677 = vrot.slane %v535, %v676
  %v678 = vlaneseq
  %v679 = vshrl.u32 %v678, 7
  %v680 = vsub.s32 1, %v679
  %v681 = vrot.slane %v535, %v680
  %v684 = vmul.f32 %v669, %v677
  %v685 = vmul.f32 %v670, %v681
  %v686 = vmul.f32 %v671, %v677
  %v687 = vmul.f32 %v672, %v681
  %v689 = vlaneseq
  %v690 = vshrl.u32 %v689, 7
  %v691 = vsub.s32 0, %v690
  %v692 = vrot.slane %v537, %v691
  %v693 = vlaneseq
  %v694 = vshrl.u32 %v693, 7
  %v695 = vsub.s32 1, %v694
  %v696 = vrot.slane %v537, %v695
  %v699 = vadd.f32 %v684, %v692
  %v700 = vadd.f32 %v685, %v696
  %v701 = vadd.f32 %v686, %v692
  %v702 = vadd.f32 %v687, %v696
  %v703 = vmax.f32 %v699, 0.0
  %v704 = vmax.f32 %v700, 0.0
  %v705 = vmax.f32 %v701, 0.0
  %v706 = vmax.f32 %v702, 0.0
  %v707 = vld [vmem:[%s3 + $0x80] sm:$0xf]
  %v708 = vld [vmem:[%s3 + $0x84] sm:$0xf]
  %v709 = vld [vmem:[%s3 + $0x88] sm:$0xf]
  %v710 = vld [vmem:[%s3 + $0x8c] sm:$0xf]
  %v711 = vld [vmem:[%s3 + $0x90] sm:$0xf]
  %v712 = vld [vmem:[%s3 + $0x94] sm:$0xf]
  %v713 = vld [vmem:[%s3 + $0x98] sm:$0xf]
  %v714 = vld [vmem:[%s3 + $0x9c] sm:$0xf]
  %v715 = vld [vmem:[%s3 + $0xa0] sm:$0xf]
  %v716 = vld [vmem:[%s3 + $0xa4] sm:$0xf]
  %v717 = vld [vmem:[%s3 + $0xa8] sm:$0xf]
  %v718 = vld [vmem:[%s3 + $0xac] sm:$0xf]
  %v719 = vld [vmem:[%s3 + $0xb0] sm:$0xf]
  %v720 = vld [vmem:[%s3 + $0xb4] sm:$0xf]
  %v721 = vld [vmem:[%s3 + $0xb8] sm:$0xf]
  %v722 = vld [vmem:[%s3 + $0xbc] sm:$0xf]
  %v723 = vld [vmem:[%s3 + $0xc0] sm:$0xf]
  %v724 = vld [vmem:[%s3 + $0xc4] sm:$0xf]
  %v725 = vld [vmem:[%s3 + $0xc8] sm:$0xf]
  %v726 = vld [vmem:[%s3 + $0xcc] sm:$0xf]
  %v727 = vld [vmem:[%s3 + $0xd0] sm:$0xf]
  %v728 = vld [vmem:[%s3 + $0xd4] sm:$0xf]
  %v729 = vld [vmem:[%s3 + $0xd8] sm:$0xf]
  %v730 = vld [vmem:[%s3 + $0xdc] sm:$0xf]
  %v731 = vld [vmem:[%s3 + $0xe0] sm:$0xf]
  %v732 = vld [vmem:[%s3 + $0xe4] sm:$0xf]
  %v733 = vld [vmem:[%s3 + $0xe8] sm:$0xf]
  %v734 = vld [vmem:[%s3 + $0xec] sm:$0xf]
  %v735 = vld [vmem:[%s3 + $0xf0] sm:$0xf]
  %v736 = vld [vmem:[%s3 + $0xf4] sm:$0xf]
  %v737 = vld [vmem:[%s3 + $0xf8] sm:$0xf]
  %v738 = vld [vmem:[%s3 + $0xfc] sm:$0xf]
  %v739 = vpack.c.bf16 %v705, %v703
  %v740 = vpack.c.bf16 %v706, %v704
  %v741 = vld [vmem:[%s4 + $0x91] ss:$0 sm:$0xff]
  %v742 = vld [vmem:[%s4 + $0x92] ss:$0 sm:$0xff]
  %v743 = vld [vmem:[%s4 + $0x93] ss:$0 sm:$0xff]
  %v776 = vunpack.c.l.b16 %v707
  %v777 = vunpack.c.l.b16 %v708
  %v778 = vunpack.c.l.b16 %v709
  %v779 = vunpack.c.l.b16 %v710
  %v780 = vunpack.c.l.b16 %v711
  %v781 = vunpack.c.l.b16 %v712
  %v782 = vunpack.c.l.b16 %v713
  %v783 = vunpack.c.l.b16 %v714
  %v784 = vunpack.c.l.b16 %v715
  %v785 = vunpack.c.l.b16 %v716
  %v786 = vunpack.c.l.b16 %v717
  %v787 = vunpack.c.l.b16 %v718
  %v788 = vunpack.c.l.b16 %v719
  %v789 = vunpack.c.l.b16 %v720
  %v790 = vunpack.c.l.b16 %v721
  %v791 = vunpack.c.l.b16 %v722
  %v792 = vunpack.c.l.b16 %v723
  %v793 = vunpack.c.l.b16 %v724
  %v794 = vunpack.c.l.b16 %v725
  %v795 = vunpack.c.l.b16 %v726
  %v796 = vunpack.c.l.b16 %v727
  %v797 = vunpack.c.l.b16 %v728
  %v798 = vunpack.c.l.b16 %v729
  %v799 = vunpack.c.l.b16 %v730
  %v800 = vunpack.c.l.b16 %v731
  %v801 = vunpack.c.l.b16 %v732
  %v802 = vunpack.c.l.b16 %v733
  %v803 = vunpack.c.l.b16 %v734
  %v804 = vunpack.c.l.b16 %v735
  %v805 = vunpack.c.l.b16 %v736
  %v806 = vunpack.c.l.b16 %v737
  %v807 = vunpack.c.l.b16 %v738
  %v808 = vpack.c.b16 %v777, %v776
  %v809 = vpack.c.b16 %v779, %v778
  %v810 = vpack.c.b16 %v781, %v780
  %v811 = vpack.c.b16 %v783, %v782
  %v812 = vpack.c.b16 %v785, %v784
  %v813 = vpack.c.b16 %v787, %v786
  %v814 = vpack.c.b16 %v789, %v788
  %v815 = vpack.c.b16 %v791, %v790
  %v816 = vpack.c.b16 %v793, %v792
  %v817 = vpack.c.b16 %v795, %v794
  %v818 = vpack.c.b16 %v797, %v796
  %v819 = vpack.c.b16 %v799, %v798
  %v820 = vpack.c.b16 %v801, %v800
  %v821 = vpack.c.b16 %v803, %v802
  %v822 = vpack.c.b16 %v805, %v804
  %v823 = vpack.c.b16 %v807, %v806
  %840 = vmatprep.subr.bf16.mxu0 0
  %841 = vmatpush1.bf16.msra.mxu0 %v815
  %842 = vmatprep.subr.bf16.mxu0 0
  %843 = vmatpush1.bf16.msra.mxu0 %v814
  %844 = vmatprep.subr.bf16.mxu0 0
  %845 = vmatpush1.bf16.msra.mxu0 %v813
  %846 = vmatprep.subr.bf16.mxu0 0
  %847 = vmatpush1.bf16.msra.mxu0 %v812
  %848 = vmatprep.subr.bf16.mxu0 0
  %849 = vmatpush1.bf16.msra.mxu0 %v811
  %850 = vmatprep.subr.bf16.mxu0 0
  %851 = vmatpush1.bf16.msra.mxu0 %v810
  %852 = vmatprep.subr.bf16.mxu0 0
  %853 = vmatpush1.bf16.msra.mxu0 %v809
  %854 = vmatprep.subr.bf16.mxu0 0
  %855 = vmatpush1.bf16.msra.mxu0 %v808
  %856 = vmatprep.subr.bf16.mxu0 0
  %857 = vmatpush2.bf16.msra.mxu0 %v823
  %858 = vmatprep.subr.bf16.mxu0 0
  %859 = vmatpush2.bf16.msra.mxu0 %v822
  %860 = vmatprep.subr.bf16.mxu0 0
  %861 = vmatpush2.bf16.msra.mxu0 %v821
  %862 = vmatprep.subr.bf16.mxu0 0
  %863 = vmatpush2.bf16.msra.mxu0 %v820
  %864 = vmatprep.subr.bf16.mxu0 0
  %865 = vmatpush2.bf16.msra.mxu0 %v819
  %866 = vmatprep.subr.bf16.mxu0 0
  %867 = vmatpush2.bf16.msra.mxu0 %v818
  %868 = vmatprep.subr.bf16.mxu0 0
  %869 = vmatpush2.bf16.msra.mxu0 %v817
  %870 = vmatprep.subr.bf16.mxu0 0
  %871 = vmatpush2.bf16.msra.mxu0 %v816
  %872 = vmatprep.mubr.bf16.mxu0 %v740
  %873 = vmatmul.mubr.bf16.gmra.mxu0 %v739
  %v874 = vpop.f32.mrf.mxu0
  %v875 = vadd.f32 %v741, %v874
  %v876 = vpop.f32.mrf.mxu0
  %v877 = vpop.f32.mrf.mxu0
  %v878 = vadd.f32 %v741, %v877
  %v879 = vpop.f32.mrf.mxu0
  %880 = vdwg.mxu0
  %v881 = vsel %vm96, %v875, 0.0
  %882 = vadd.xlane.f32.xlu0 %v881
  %v883 = vpop.xlane.xlu0 %882
  %v884 = vsel %vm96, %v878, 0.0
  %885 = vadd.xlane.f32.xlu0 %v884
  %v886 = vpop.xlane.xlu0 %885
  %v887 = vmul.f32 %v875, %v875
  %v888 = vmul.f32 %v878, %v878
  %v889 = vsel %vm96, %v887, 0.0
  %890 = vadd.xlane.f32.xlu0 %v889
  %v891 = vpop.xlane.xlu0 %890
  %v892 = vsel %vm96, %v888, 0.0
  %893 = vadd.xlane.f32.xlu0 %v892
  %v894 = vpop.xlane.xlu0 %893
  %v895 = vmul.f32 %v883, 0.015625
  %v896 = vmul.f32 %v886, 0.015625
  %v897 = vmul.f32 %v891, 0.015625
  %v898 = vmul.f32 %v894, 0.015625
  %v899 = vmul.f32 %v895, %v895
  %v900 = vmul.f32 %v896, %v896
  %v901 = vsub.f32 %v897, %v899
  %v902 = vsub.f32 %v898, %v900
  %v903 = vmax.f32 %v901, 0.0
  %v904 = vmax.f32 %v902, 0.0
  %v905 = vsub.f32 %v875, %v895
  %v906 = vsub.f32 %v878, %v896
  %v907 = vadd.f32 %v903, 1e-05
  %v908 = vadd.f32 %v904, 1e-05
  %v909 = vrsqrt.pop %v907
  %v910 = vrsqrt.pop %v908
  %v911 = vmul.f32 %v905, %v909
  %v912 = vmul.f32 %v906, %v910
  %v913 = vmul.f32 %v911, %v742
  %v914 = vmul.f32 %v912, %v742
  %v915 = vadd.f32 %v913, %v743
  %v916 = vadd.f32 %v914, %v743
  %v917 = vmax.f32 %v915, 0.0
  %v918 = vmax.f32 %v916, 0.0
  %v919 = vld [vmem:[%s2 + $0xa0] sm:$0xff]
  %v920 = vld [vmem:[%s2 + $0xa8] sm:$0xff]
  %v921 = vld [vmem:[%s2 + $0xb0] sm:$0xff]
  %v922 = vld [vmem:[%s2 + $0xb8] sm:$0xff]
  %v923 = vld [vmem:[%s2 + $0xc0] sm:$0xff]
  %v924 = vld [vmem:[%s2 + $0xc8] sm:$0xff]
  %v925 = vld [vmem:[%s2 + $0xd0] sm:$0xff]
  %v926 = vld [vmem:[%s2 + $0xd8] sm:$0xff]
  %v927 = vpack.c.bf16 %v918, %v917
  %s928 = scalar_lea.vmem %s4, 148
  %v929 = vld [vmem:[%s928] ss:$8 sm:$0x3]
  %s930 = scalar_lea.vmem %s4, 149
  %v931 = vld [vmem:[%s930] ss:$8 sm:$0x3]
  %s932 = scalar_lea.vmem %s4, 150
  %v933 = vld [vmem:[%s932] ss:$8 sm:$0x3]
  %v935 = vlaneseq
  %v936 = vshrl.u32 %v935, 7
  %v937 = vsub.s32 0, %v936
  %v938 = vrot.slane %v929, %v937
  %v939 = vlaneseq
  %v940 = vshrl.u32 %v939, 7
  %v941 = vsub.s32 1, %v940
  %v942 = vrot.slane %v929, %v941
  %v953 = vunpack.c.l.b16 %v919
  %v954 = vunpack.c.h.b16 %v919
  %v955 = vunpack.c.l.b16 %v920
  %v956 = vunpack.c.h.b16 %v920
  %v957 = vunpack.c.l.b16 %v921
  %v958 = vunpack.c.h.b16 %v921
  %v959 = vunpack.c.l.b16 %v922
  %v960 = vunpack.c.h.b16 %v922
  %v961 = vunpack.c.l.b16 %v923
  %v962 = vunpack.c.h.b16 %v923
  %v963 = vunpack.c.l.b16 %v924
  %v964 = vunpack.c.h.b16 %v924
  %v965 = vunpack.c.l.b16 %v925
  %v966 = vunpack.c.h.b16 %v925
  %v967 = vunpack.c.l.b16 %v926
  %v968 = vunpack.c.h.b16 %v926
  %v969 = vpack.c.b16 %v955, %v953
  %v970 = vpack.c.b16 %v956, %v954
  %v971 = vpack.c.b16 %v959, %v957
  %v972 = vpack.c.b16 %v960, %v958
  %v973 = vpack.c.b16 %v963, %v961
  %v974 = vpack.c.b16 %v964, %v962
  %v975 = vpack.c.b16 %v967, %v965
  %v976 = vpack.c.b16 %v968, %v966
  %v986 = vsel %vm96, %v927, 0
  %988 = vmatprep.subr.bf16.mxu0 0
  %989 = vmatpush1.bf16.msra.mxu0 0
  %990 = vmatprep.subr.bf16.mxu0 0
  %991 = vmatpush1.bf16.msra.mxu0 0
  %992 = vmatprep.subr.bf16.mxu0 0
  %993 = vmatpush1.bf16.msra.mxu0 0
  %994 = vmatprep.subr.bf16.mxu0 0
  %995 = vmatpush1.bf16.msra.mxu0 0
  %996 = vmatprep.subr.bf16.mxu0 %v976
  %997 = vmatpush1.bf16.msra.mxu0 %v975
  %998 = vmatprep.subr.bf16.mxu0 %v974
  %999 = vmatpush1.bf16.msra.mxu0 %v973
  %1000 = vmatprep.subr.bf16.mxu0 %v972
  %1001 = vmatpush1.bf16.msra.mxu0 %v971
  %1002 = vmatprep.subr.bf16.mxu0 %v970
  %1003 = vmatpush1.bf16.msra.mxu0 %v969
  %1004 = vmatprep.subr.bf16.mxu0 0
  %1005 = vmatpush2.bf16.msra.mxu0 0
  %1006 = vmatprep.subr.bf16.mxu0 0
  %1007 = vmatpush2.bf16.msra.mxu0 0
  %1008 = vmatprep.subr.bf16.mxu0 0
  %1009 = vmatpush2.bf16.msra.mxu0 0
  %1010 = vmatprep.subr.bf16.mxu0 0
  %1011 = vmatpush2.bf16.msra.mxu0 0
  %1012 = vmatprep.subr.bf16.mxu0 0
  %1013 = vmatpush2.bf16.msra.mxu0 0
  %1014 = vmatprep.subr.bf16.mxu0 0
  %1015 = vmatpush2.bf16.msra.mxu0 0
  %1016 = vmatprep.subr.bf16.mxu0 0
  %1017 = vmatpush2.bf16.msra.mxu0 0
  %1018 = vmatprep.subr.bf16.mxu0 0
  %1019 = vmatpush2.bf16.msra.mxu0 0
  %1020 = vmatprep.mubr.bf16.mxu0 0
  %1021 = vmatmul.mubr.bf16.gmra.mxu0 %v986
  %v1022 = vpop.f32.mrf.mxu0
  %v1023 = vadd.f32 %v938, %v1022
  %v1024 = vpop.f32.mrf.mxu0
  %v1025 = vadd.f32 %v942, %v1024
  %v1026 = vpop.f32.mrf.mxu0
  %v1027 = vadd.f32 %v938, %v1026
  %v1028 = vpop.f32.mrf.mxu0
  %v1029 = vadd.f32 %v942, %v1028
  %1030 = vdwg.mxu0
  %v1031 = vadd.f32 %v1023, %v1025
  %1032 = vadd.xlane.f32.xlu0 %v1031
  %v1033 = vpop.xlane.xlu0 %1032
  %v1034 = vadd.f32 %v1027, %v1029
  %1035 = vadd.xlane.f32.xlu0 %v1034
  %v1036 = vpop.xlane.xlu0 %1035
  %v1037 = vmul.f32 %v1023, %v1023
  %v1038 = vmul.f32 %v1025, %v1025
  %v1039 = vmul.f32 %v1027, %v1027
  %v1040 = vmul.f32 %v1029, %v1029
  %v1041 = vadd.f32 %v1037, %v1038
  %1042 = vadd.xlane.f32.xlu0 %v1041
  %v1043 = vpop.xlane.xlu0 %1042
  %v1044 = vadd.f32 %v1039, %v1040
  %1045 = vadd.xlane.f32.xlu0 %v1044
  %v1046 = vpop.xlane.xlu0 %1045
  %v1047 = vmul.f32 %v1033, 0.00390625
  %v1048 = vmul.f32 %v1036, 0.00390625
  %v1049 = vmul.f32 %v1043, 0.00390625
  %v1050 = vmul.f32 %v1046, 0.00390625
  %v1051 = vmul.f32 %v1047, %v1047
  %v1052 = vmul.f32 %v1048, %v1048
  %v1053 = vsub.f32 %v1049, %v1051
  %v1054 = vsub.f32 %v1050, %v1052
  %v1055 = vmax.f32 %v1053, 0.0
  %v1056 = vmax.f32 %v1054, 0.0
  %v1057 = vsub.f32 %v1023, %v1047
  %v1058 = vsub.f32 %v1025, %v1047
  %v1059 = vsub.f32 %v1027, %v1048
  %v1060 = vsub.f32 %v1029, %v1048
  %v1061 = vadd.f32 %v1055, 1e-05
  %v1062 = vadd.f32 %v1056, 1e-05
  %v1063 = vrsqrt.pop %v1061
  %v1064 = vrsqrt.pop %v1062
  %v1065 = vmul.f32 %v1057, %v1063
  %v1066 = vmul.f32 %v1058, %v1063
  %v1067 = vmul.f32 %v1059, %v1064
  %v1068 = vmul.f32 %v1060, %v1064
  %v1070 = vlaneseq
  %v1071 = vshrl.u32 %v1070, 7
  %v1072 = vsub.s32 0, %v1071
  %v1073 = vrot.slane %v931, %v1072
  %v1074 = vlaneseq
  %v1075 = vshrl.u32 %v1074, 7
  %v1076 = vsub.s32 1, %v1075
  %v1077 = vrot.slane %v931, %v1076
  %v1080 = vmul.f32 %v1065, %v1073
  %v1081 = vmul.f32 %v1066, %v1077
  %v1082 = vmul.f32 %v1067, %v1073
  %v1083 = vmul.f32 %v1068, %v1077
  %v1085 = vlaneseq
  %v1086 = vshrl.u32 %v1085, 7
  %v1087 = vsub.s32 0, %v1086
  %v1088 = vrot.slane %v933, %v1087
  %v1089 = vlaneseq
  %v1090 = vshrl.u32 %v1089, 7
  %v1091 = vsub.s32 1, %v1090
  %v1092 = vrot.slane %v933, %v1091
  %v1095 = vadd.f32 %v1080, %v1088
  %v1096 = vadd.f32 %v1081, %v1092
  %v1097 = vadd.f32 %v1082, %v1088
  %v1098 = vadd.f32 %v1083, %v1092
  %v1099 = vmax.f32 %v1095, 0.0
  %v1100 = vmax.f32 %v1096, 0.0
  %v1101 = vmax.f32 %v1097, 0.0
  %v1102 = vmax.f32 %v1098, 0.0
  %v1103 = vld [vmem:[%s3 + $0x100] sm:$0xf]
  %v1104 = vld [vmem:[%s3 + $0x104] sm:$0xf]
  %v1105 = vld [vmem:[%s3 + $0x108] sm:$0xf]
  %v1106 = vld [vmem:[%s3 + $0x10c] sm:$0xf]
  %v1107 = vld [vmem:[%s3 + $0x110] sm:$0xf]
  %v1108 = vld [vmem:[%s3 + $0x114] sm:$0xf]
  %v1109 = vld [vmem:[%s3 + $0x118] sm:$0xf]
  %v1110 = vld [vmem:[%s3 + $0x11c] sm:$0xf]
  %v1111 = vld [vmem:[%s3 + $0x120] sm:$0xf]
  %v1112 = vld [vmem:[%s3 + $0x124] sm:$0xf]
  %v1113 = vld [vmem:[%s3 + $0x128] sm:$0xf]
  %v1114 = vld [vmem:[%s3 + $0x12c] sm:$0xf]
  %v1115 = vld [vmem:[%s3 + $0x130] sm:$0xf]
  %v1116 = vld [vmem:[%s3 + $0x134] sm:$0xf]
  %v1117 = vld [vmem:[%s3 + $0x138] sm:$0xf]
  %v1118 = vld [vmem:[%s3 + $0x13c] sm:$0xf]
  %v1119 = vld [vmem:[%s3 + $0x140] sm:$0xf]
  %v1120 = vld [vmem:[%s3 + $0x144] sm:$0xf]
  %v1121 = vld [vmem:[%s3 + $0x148] sm:$0xf]
  %v1122 = vld [vmem:[%s3 + $0x14c] sm:$0xf]
  %v1123 = vld [vmem:[%s3 + $0x150] sm:$0xf]
  %v1124 = vld [vmem:[%s3 + $0x154] sm:$0xf]
  %v1125 = vld [vmem:[%s3 + $0x158] sm:$0xf]
  %v1126 = vld [vmem:[%s3 + $0x15c] sm:$0xf]
  %v1127 = vld [vmem:[%s3 + $0x160] sm:$0xf]
  %v1128 = vld [vmem:[%s3 + $0x164] sm:$0xf]
  %v1129 = vld [vmem:[%s3 + $0x168] sm:$0xf]
  %v1130 = vld [vmem:[%s3 + $0x16c] sm:$0xf]
  %v1131 = vld [vmem:[%s3 + $0x170] sm:$0xf]
  %v1132 = vld [vmem:[%s3 + $0x174] sm:$0xf]
  %v1133 = vld [vmem:[%s3 + $0x178] sm:$0xf]
  %v1134 = vld [vmem:[%s3 + $0x17c] sm:$0xf]
  %v1135 = vpack.c.bf16 %v1101, %v1099
  %v1136 = vpack.c.bf16 %v1102, %v1100
  %v1137 = vld [vmem:[%s4 + $0x97] ss:$0 sm:$0xff]
  %v1138 = vld [vmem:[%s4 + $0xa0] ss:$0 sm:$0xff]
  %v1139 = vld [vmem:[%s4 + $0xa1] ss:$0 sm:$0xff]
  %v1172 = vunpack.c.l.b16 %v1103
  %v1173 = vunpack.c.l.b16 %v1104
  %v1174 = vunpack.c.l.b16 %v1105
  %v1175 = vunpack.c.l.b16 %v1106
  %v1176 = vunpack.c.l.b16 %v1107
  %v1177 = vunpack.c.l.b16 %v1108
  %v1178 = vunpack.c.l.b16 %v1109
  %v1179 = vunpack.c.l.b16 %v1110
  %v1180 = vunpack.c.l.b16 %v1111
  %v1181 = vunpack.c.l.b16 %v1112
  %v1182 = vunpack.c.l.b16 %v1113
  %v1183 = vunpack.c.l.b16 %v1114
  %v1184 = vunpack.c.l.b16 %v1115
  %v1185 = vunpack.c.l.b16 %v1116
  %v1186 = vunpack.c.l.b16 %v1117
  %v1187 = vunpack.c.l.b16 %v1118
  %v1188 = vunpack.c.l.b16 %v1119
  %v1189 = vunpack.c.l.b16 %v1120
  %v1190 = vunpack.c.l.b16 %v1121
  %v1191 = vunpack.c.l.b16 %v1122
  %v1192 = vunpack.c.l.b16 %v1123
  %v1193 = vunpack.c.l.b16 %v1124
  %v1194 = vunpack.c.l.b16 %v1125
  %v1195 = vunpack.c.l.b16 %v1126
  %v1196 = vunpack.c.l.b16 %v1127
  %v1197 = vunpack.c.l.b16 %v1128
  %v1198 = vunpack.c.l.b16 %v1129
  %v1199 = vunpack.c.l.b16 %v1130
  %v1200 = vunpack.c.l.b16 %v1131
  %v1201 = vunpack.c.l.b16 %v1132
  %v1202 = vunpack.c.l.b16 %v1133
  %v1203 = vunpack.c.l.b16 %v1134
  %v1204 = vpack.c.b16 %v1173, %v1172
  %v1205 = vpack.c.b16 %v1175, %v1174
  %v1206 = vpack.c.b16 %v1177, %v1176
  %v1207 = vpack.c.b16 %v1179, %v1178
  %v1208 = vpack.c.b16 %v1181, %v1180
  %v1209 = vpack.c.b16 %v1183, %v1182
  %v1210 = vpack.c.b16 %v1185, %v1184
  %v1211 = vpack.c.b16 %v1187, %v1186
  %v1212 = vpack.c.b16 %v1189, %v1188
  %v1213 = vpack.c.b16 %v1191, %v1190
  %v1214 = vpack.c.b16 %v1193, %v1192
  %v1215 = vpack.c.b16 %v1195, %v1194
  %v1216 = vpack.c.b16 %v1197, %v1196
  %v1217 = vpack.c.b16 %v1199, %v1198
  %v1218 = vpack.c.b16 %v1201, %v1200
  %v1219 = vpack.c.b16 %v1203, %v1202
  %1236 = vmatprep.subr.bf16.mxu0 0
  %1237 = vmatpush1.bf16.msra.mxu0 %v1211
  %1238 = vmatprep.subr.bf16.mxu0 0
  %1239 = vmatpush1.bf16.msra.mxu0 %v1210
  %1240 = vmatprep.subr.bf16.mxu0 0
  %1241 = vmatpush1.bf16.msra.mxu0 %v1209
  %1242 = vmatprep.subr.bf16.mxu0 0
  %1243 = vmatpush1.bf16.msra.mxu0 %v1208
  %1244 = vmatprep.subr.bf16.mxu0 0
  %1245 = vmatpush1.bf16.msra.mxu0 %v1207
  %1246 = vmatprep.subr.bf16.mxu0 0
  %1247 = vmatpush1.bf16.msra.mxu0 %v1206
  %1248 = vmatprep.subr.bf16.mxu0 0
  %1249 = vmatpush1.bf16.msra.mxu0 %v1205
  %1250 = vmatprep.subr.bf16.mxu0 0
  %1251 = vmatpush1.bf16.msra.mxu0 %v1204
  %1252 = vmatprep.subr.bf16.mxu0 0
  %1253 = vmatpush2.bf16.msra.mxu0 %v1219
  %1254 = vmatprep.subr.bf16.mxu0 0
  %1255 = vmatpush2.bf16.msra.mxu0 %v1218
  %1256 = vmatprep.subr.bf16.mxu0 0
  %1257 = vmatpush2.bf16.msra.mxu0 %v1217
  %1258 = vmatprep.subr.bf16.mxu0 0
  %1259 = vmatpush2.bf16.msra.mxu0 %v1216
  %1260 = vmatprep.subr.bf16.mxu0 0
  %1261 = vmatpush2.bf16.msra.mxu0 %v1215
  %1262 = vmatprep.subr.bf16.mxu0 0
  %1263 = vmatpush2.bf16.msra.mxu0 %v1214
  %1264 = vmatprep.subr.bf16.mxu0 0
  %1265 = vmatpush2.bf16.msra.mxu0 %v1213
  %1266 = vmatprep.subr.bf16.mxu0 0
  %1267 = vmatpush2.bf16.msra.mxu0 %v1212
  %1268 = vmatprep.mubr.bf16.mxu0 %v1136
  %1269 = vmatmul.mubr.bf16.gmra.mxu0 %v1135
  %v1270 = vpop.f32.mrf.mxu0
  %v1271 = vadd.f32 %v1137, %v1270
  %v1272 = vpop.f32.mrf.mxu0
  %v1273 = vpop.f32.mrf.mxu0
  %v1274 = vadd.f32 %v1137, %v1273
  %v1275 = vpop.f32.mrf.mxu0
  %1276 = vdwg.mxu0
  %v1277 = vsel %vm96, %v1271, 0.0
  %1278 = vadd.xlane.f32.xlu0 %v1277
  %v1279 = vpop.xlane.xlu0 %1278
  %v1280 = vsel %vm96, %v1274, 0.0
  %1281 = vadd.xlane.f32.xlu0 %v1280
  %v1282 = vpop.xlane.xlu0 %1281
  %v1283 = vmul.f32 %v1271, %v1271
  %v1284 = vmul.f32 %v1274, %v1274
  %v1285 = vsel %vm96, %v1283, 0.0
  %1286 = vadd.xlane.f32.xlu0 %v1285
  %v1287 = vpop.xlane.xlu0 %1286
  %v1288 = vsel %vm96, %v1284, 0.0
  %1289 = vadd.xlane.f32.xlu0 %v1288
  %v1290 = vpop.xlane.xlu0 %1289
  %v1291 = vmul.f32 %v1279, 0.015625
  %v1292 = vmul.f32 %v1282, 0.015625
  %v1293 = vmul.f32 %v1287, 0.015625
  %v1294 = vmul.f32 %v1290, 0.015625
  %v1295 = vmul.f32 %v1291, %v1291
  %v1296 = vmul.f32 %v1292, %v1292
  %v1297 = vsub.f32 %v1293, %v1295
  %v1298 = vsub.f32 %v1294, %v1296
  %v1299 = vmax.f32 %v1297, 0.0
  %v1300 = vmax.f32 %v1298, 0.0
  %v1301 = vsub.f32 %v1271, %v1291
  %v1302 = vsub.f32 %v1274, %v1292
  %v1303 = vadd.f32 %v1299, 1e-05
  %v1304 = vadd.f32 %v1300, 1e-05
  %v1305 = vrsqrt.pop %v1303
  %v1306 = vrsqrt.pop %v1304
  %v1307 = vmul.f32 %v1301, %v1305
  %v1308 = vmul.f32 %v1302, %v1306
  %v1309 = vmul.f32 %v1307, %v1138
  %v1310 = vmul.f32 %v1308, %v1138
  %v1311 = vadd.f32 %v1309, %v1139
  %v1312 = vadd.f32 %v1310, %v1139
  %v1313 = vmax.f32 %v1311, 0.0
  %v1314 = vmax.f32 %v1312, 0.0
  %v1315 = vld [vmem:[%s1] sm:$0x3]
  %v1317 = vsel %vm87, %v1315, 0
  %1319 = vmatprep.subr.mxu0 0.0
  %1320 = vmatpush1.msra.mxu0 0.0
  %1321 = vmatprep.subr.mxu0 0.0
  %1322 = vmatpush1.msra.mxu0 0.0
  %1323 = vmatprep.subr.mxu0 0.0
  %1324 = vmatpush1.msra.mxu0 0.0
  %1325 = vmatprep.subr.mxu0 0.0
  %1326 = vmatpush1.msra.mxu0 0.0
  %1327 = vmatprep.subr.mxu0 0.0
  %1328 = vmatpush1.msra.mxu0 0.0
  %1329 = vmatprep.subr.mxu0 0.0
  %1330 = vmatpush1.msra.mxu0 0.0
  %1331 = vmatprep.subr.mxu0 0.0
  %1332 = vmatpush1.msra.mxu0 0.0
  %1333 = vmatprep.subr.mxu0 0.0
  %1334 = vmatpush1.msra.mxu0 0.0
  %1335 = vmatprep.subr.mxu0 0.0
  %1336 = vmatpush1.msra.mxu0 0.0
  %1337 = vmatprep.subr.mxu0 0.0
  %1338 = vmatpush1.msra.mxu0 0.0
  %1339 = vmatprep.subr.mxu0 0.0
  %1340 = vmatpush1.msra.mxu0 0.0
  %1341 = vmatprep.subr.mxu0 0.0
  %1342 = vmatpush1.msra.mxu0 0.0
  %1343 = vmatprep.subr.mxu0 0.0
  %1344 = vmatpush1.msra.mxu0 0.0
  %1345 = vmatprep.subr.mxu0 0.0
  %1346 = vmatpush1.msra.mxu0 0.0
  %1347 = vmatprep.subr.mxu0 0.0
  %1348 = vmatpush1.msra.mxu0 %v1314
  %1349 = vmatprep.subr.mxu0 0.0
  %1350 = vmatpush1.msra.mxu0 %v1313
  %1351 = vmatprep.subr.mxu0 0.0
  %1352 = vmatpush2.msra.mxu0 0.0
  %1353 = vmatprep.subr.mxu0 0.0
  %1354 = vmatpush2.msra.mxu0 0.0
  %1355 = vmatprep.subr.mxu0 0.0
  %1356 = vmatpush2.msra.mxu0 0.0
  %1357 = vmatprep.subr.mxu0 0.0
  %1358 = vmatpush2.msra.mxu0 0.0
  %1359 = vmatprep.subr.mxu0 0.0
  %1360 = vmatpush2.msra.mxu0 0.0
  %1361 = vmatprep.subr.mxu0 0.0
  %1362 = vmatpush2.msra.mxu0 0.0
  %1363 = vmatprep.subr.mxu0 0.0
  %1364 = vmatpush2.msra.mxu0 0.0
  %1365 = vmatprep.subr.mxu0 0.0
  %1366 = vmatpush2.msra.mxu0 0.0
  %1367 = vmatprep.subr.mxu0 0.0
  %1368 = vmatpush2.msra.mxu0 0.0
  %1369 = vmatprep.subr.mxu0 0.0
  %1370 = vmatpush2.msra.mxu0 0.0
  %1371 = vmatprep.subr.mxu0 0.0
  %1372 = vmatpush2.msra.mxu0 0.0
  %1373 = vmatprep.subr.mxu0 0.0
  %1374 = vmatpush2.msra.mxu0 0.0
  %1375 = vmatprep.subr.mxu0 0.0
  %1376 = vmatpush2.msra.mxu0 0.0
  %1377 = vmatprep.subr.mxu0 0.0
  %1378 = vmatpush2.msra.mxu0 0.0
  %1379 = vmatprep.subr.mxu0 0.0
  %1380 = vmatpush2.msra.mxu0 0.0
  %1381 = vmatprep.subr.mxu0 0.0
  %1382 = vmatpush2.msra.mxu0 0.0
  %1383 = vmatprep.mubr.f32.mxu0 0.0
  %1384 = vmatmul.mubr.f32.gmra.mxu0 %v1317
  %v1385 = vpop.f32.mrf.mxu0
  %v1386 = vadd.f32 0.0, %v1385
  %v1387 = vpop.f32.mrf.mxu0
  %1388 = vdwg.mxu0
  %v1389 = vld [vmem:[%s4] sm:$0xff]
  %v1390 = vld [vmem:[%s4 + $0x8] sm:$0xff]
  %v1391 = vld [vmem:[%s4 + $0x10] sm:$0xff]
  %v1392 = vld [vmem:[%s4 + $0x18] sm:$0xff]
  %v1393 = vld [vmem:[%s4 + $0x20] sm:$0xff]
  %v1394 = vld [vmem:[%s4 + $0x28] sm:$0xff]
  %v1395 = vld [vmem:[%s4 + $0x30] sm:$0xff]
  %v1396 = vld [vmem:[%s4 + $0x38] sm:$0xff]
  %v1397 = vld [vmem:[%s4 + $0x40] sm:$0xff]
  %v1398 = vld [vmem:[%s4 + $0x48] sm:$0xff]
  %v1399 = vld [vmem:[%s4 + $0x50] sm:$0xff]
  %v1400 = vld [vmem:[%s4 + $0x58] sm:$0xff]
  %v1401 = vld [vmem:[%s4 + $0x60] sm:$0xff]
  %v1402 = vld [vmem:[%s4 + $0x68] sm:$0xff]
  %v1403 = vld [vmem:[%s4 + $0x70] sm:$0xff]
  %v1404 = vld [vmem:[%s4 + $0x78] sm:$0xff]
  %s1405 = scalar_lea.vmem %s4, 162
  %v1406 = vld [vmem:[%s1405] ss:$8 sm:$0x3]
  %v1408 = vlaneseq
  %v1409 = vshrl.u32 %v1408, 7
  %v1410 = vsub.s32 0, %v1409
  %v1411 = vrot.slane %v1406, %v1410
  %v1412 = vlaneseq
  %v1413 = vshrl.u32 %v1412, 7
  %v1414 = vsub.s32 1, %v1413
  %v1415 = vrot.slane %v1406, %v1414
  %v1419 = vsel %vm96, %v1386, 0
  %1421 = vmatprep.subr.mxu0 0.0
  %1422 = vmatpush1.msra.mxu0 0.0
  %1423 = vmatprep.subr.mxu0 0.0
  %1424 = vmatpush1.msra.mxu0 0.0
  %1425 = vmatprep.subr.mxu0 0.0
  %1426 = vmatpush1.msra.mxu0 0.0
  %1427 = vmatprep.subr.mxu0 0.0
  %1428 = vmatpush1.msra.mxu0 0.0
  %1429 = vmatprep.subr.mxu0 0.0
  %1430 = vmatpush1.msra.mxu0 0.0
  %1431 = vmatprep.subr.mxu0 0.0
  %1432 = vmatpush1.msra.mxu0 0.0
  %1433 = vmatprep.subr.mxu0 0.0
  %1434 = vmatpush1.msra.mxu0 0.0
  %1435 = vmatprep.subr.mxu0 0.0
  %1436 = vmatpush1.msra.mxu0 0.0
  %1437 = vmatprep.subr.mxu0 %v1404
  %1438 = vmatpush1.msra.mxu0 %v1403
  %1439 = vmatprep.subr.mxu0 %v1402
  %1440 = vmatpush1.msra.mxu0 %v1401
  %1441 = vmatprep.subr.mxu0 %v1400
  %1442 = vmatpush1.msra.mxu0 %v1399
  %1443 = vmatprep.subr.mxu0 %v1398
  %1444 = vmatpush1.msra.mxu0 %v1397
  %1445 = vmatprep.subr.mxu0 %v1396
  %1446 = vmatpush1.msra.mxu0 %v1395
  %1447 = vmatprep.subr.mxu0 %v1394
  %1448 = vmatpush1.msra.mxu0 %v1393
  %1449 = vmatprep.subr.mxu0 %v1392
  %1450 = vmatpush1.msra.mxu0 %v1391
  %1451 = vmatprep.subr.mxu0 %v1390
  %1452 = vmatpush1.msra.mxu0 %v1389
  %1453 = vmatprep.subr.mxu0 0.0
  %1454 = vmatpush2.msra.mxu0 0.0
  %1455 = vmatprep.subr.mxu0 0.0
  %1456 = vmatpush2.msra.mxu0 0.0
  %1457 = vmatprep.subr.mxu0 0.0
  %1458 = vmatpush2.msra.mxu0 0.0
  %1459 = vmatprep.subr.mxu0 0.0
  %1460 = vmatpush2.msra.mxu0 0.0
  %1461 = vmatprep.subr.mxu0 0.0
  %1462 = vmatpush2.msra.mxu0 0.0
  %1463 = vmatprep.subr.mxu0 0.0
  %1464 = vmatpush2.msra.mxu0 0.0
  %1465 = vmatprep.subr.mxu0 0.0
  %1466 = vmatpush2.msra.mxu0 0.0
  %1467 = vmatprep.subr.mxu0 0.0
  %1468 = vmatpush2.msra.mxu0 0.0
  %1469 = vmatprep.subr.mxu0 0.0
  %1470 = vmatpush2.msra.mxu0 0.0
  %1471 = vmatprep.subr.mxu0 0.0
  %1472 = vmatpush2.msra.mxu0 0.0
  %1473 = vmatprep.subr.mxu0 0.0
  %1474 = vmatpush2.msra.mxu0 0.0
  %1475 = vmatprep.subr.mxu0 0.0
  %1476 = vmatpush2.msra.mxu0 0.0
  %1477 = vmatprep.subr.mxu0 0.0
  %1478 = vmatpush2.msra.mxu0 0.0
  %1479 = vmatprep.subr.mxu0 0.0
  %1480 = vmatpush2.msra.mxu0 0.0
  %1481 = vmatprep.subr.mxu0 0.0
  %1482 = vmatpush2.msra.mxu0 0.0
  %1483 = vmatprep.subr.mxu0 0.0
  %1484 = vmatpush2.msra.mxu0 0.0
  %1485 = vmatprep.mubr.f32.mxu0 0.0
  %1486 = vmatmul.mubr.f32.gmra.mxu0 %v1419
  %v1487 = vpop.f32.mrf.mxu0
  %v1488 = vadd.f32 %v1411, %v1487
  %v1489 = vpop.f32.mrf.mxu0
  %v1490 = vadd.f32 %v1415, %v1489
  %1491 = vdwg.mxu0
  %v1494 = vcombine.low %v1488, %v1490
  %v1496 = vunpack.c.l.s4 1983009808
  %v1497 = vunpack.c.0.s8 %v1496
  %v1498 = vlaneseq
  %v1499 = vshrl.u32 %v1498, 7
  %v1500 = vsub.s32 %v1497, %v1499
  %v1501 = vrot.slane %v1494, %v1500
  %1503 = vst [vmem:[%s5] sm:$0xf] %v1501
  // Predicated region
  $region22: #{linear_net_forward.1} parent=0 // pred_check
    _
  $region23: #{linear_net_forward.1} parent=0 // pred_check_branch
    %1505 = sbr.rel (0) target = $region25
  $region24: #{linear_net_forward.1} parent=0 // pred_region
    _
  $region25: #{linear_net_forward.1} parent=0 // pred_fallthru
    _
  // Predicated region
  $region26: #{linear_net_forward.1} parent=0 // pred_check
    _
  $region27: #{linear_net_forward.1} parent=0 // pred_check_branch
    %1507 = sbr.rel (0) target = $region29
  $region28: #{linear_net_forward.1} parent=0 // pred_region
    _
  $region29: #{linear_net_forward.1} parent=0 // pred_fallthru
    _

</llo_original>
